<compile_context>
chip_gen: v6e
topology: v6e:2x2x1
jax: 0.10.0
libtpu: 0.0.40
codegen_flags: <defaults>
</compile_context>

<pallas_src>
import functools

import jax
import jax.numpy as jnp
from jax import lax
from jax.experimental import pallas as pl
from jax.experimental.pallas import tpu as pltpu

LANE = 128
NEG_BIG = -1e30  # additive softmax mask; exp(~-1e30) underflows to exactly 0 in f32


def _round_up(x, m):
    return ((x + m - 1) // m) * m


def _layernorm(h, gamma, beta, eps=1e-5):
    # two-pass (centered) variance: more robust than mean(h*h) - mu^2
    mu = jnp.mean(h, axis=-1, keepdims=True)
    hc = h - mu
    var = jnp.mean(hc * hc, axis=-1, keepdims=True)
    return hc * lax.rsqrt(var + eps) * gamma + beta


def ncqr_kernel(x_ref, w1_ref, w2_ref, wh_ref, p_ref, tri_ref, out_ref, *,
                num_support, s_pad):
    h0 = w1_ref.shape[1]
    h1 = w2_ref.shape[1]
    hp = wh_ref.shape[1]          # lane-padded fused-head width (multiple of 128)
    S = num_support

    x = x_ref[...]

    # linear1 -> ln1 -> relu
    h = jnp.dot(x, w1_ref[...], preferred_element_type=jnp.float32) + p_ref[0:1, :h0]
    h = _layernorm(h, p_ref[1:2, :h0], p_ref[2:3, :h0])
    h = jnp.maximum(h, 0.0)

    # linear2 -> ln2 -> relu
    h = jnp.dot(h, w2_ref[...], preferred_element_type=jnp.float32) + p_ref[3:4, :h1]
    h = _layernorm(h, p_ref[4:5, :h1], p_ref[5:6, :h1])
    h = jnp.maximum(h, 0.0)

    # fused heads: one lane-dense matmul for V / alpha / beta (no bias yet)
    heads = jnp.dot(h, wh_ref[...], preferred_element_type=jnp.float32)

    # softmax logits: row 6 of the slab carries the V bias with the additive
    # mask (-1e30) pre-baked into every non-V column -> a single full-width add.
    q = heads + p_ref[6:7, :hp]
    q = q - jnp.max(q, axis=-1, keepdims=True)
    e = jnp.exp(q)                                  # masked lanes are exactly 0

    # cumsum via the hoisted upper-triangular ones matrix (one MXU push);
    # its last column is the row sum for free -> no separate XLU reduction.
    cum_e = jnp.dot(e, tri_ref[...], preferred_element_type=jnp.float32)
    inv_sum = pl.reciprocal(cum_e[:, hp - 1:hp], approx=False)

    # alpha / beta biases live at columns S, S+1 of slab row 7 (scalar slices)
    a = jnp.maximum(heads[:, S:S + 1] + p_ref[7:8, S:S + 1], 0.0)   # relu(alpha)
    b = heads[:, S + 1:S + 2] + p_ref[7:8, S + 1:S + 2]             # beta

    # out = a * cumsum(softmax) + b  (scalar factors reordered: a*inv first)
    y = (a * inv_sum) * cum_e + b                   # (tb, hp); only cols < S used

    # transpose to a lane-dense (S_pad, tb) block -> 16x smaller HBM writeback
    yt = jnp.transpose(y)                           # (hp, tb) via XLU
    out_ref[...] = yt[:s_pad, :]


def prepare_params(params):
    """Host-side packing; call ONCE per parameter set (hoisted out of forward)."""
    (w1, b1, g1, be1, w2, b2, g2, be2, wv, bv, wa, ba, wb, bb) = params
    h0 = w1.shape[1]
    h1 = w2.shape[1]
    S = wv.shape[1]

    # fuse + lane-pad the three heads into one [h1, hp] weight
    hp = _round_up(max(S + 2, LANE), LANE)
    wh = jnp.zeros((h1, hp), jnp.float32)
    wh = wh.at[:, :S].set(wv).at[:, S:S + 1].set(wa).at[:, S + 1:S + 2].set(wb)

    # pack the small per-feature params into a single [8, W] slab
    W = _round_up(max(h0, h1, hp), LANE)

    def row(v):
        v = v.reshape(1, -1).astype(jnp.float32)
        return jnp.pad(v, ((0, 0), (0, W - v.shape[1])))

    # row 6: V bias with the softmax mask pre-added for every non-V column
    qbias = jnp.full((1, hp), NEG_BIG, jnp.float32).at[:, :S].set(bv)
    # row 7: alpha / beta biases at their head columns
    abbias = jnp.zeros((1, hp), jnp.float32)
    abbias = abbias.at[:, S:S + 1].set(ba).at[:, S + 1:S + 2].set(bb)

    pslab = jnp.concatenate(
        [row(b1), row(g1), row(be1), row(b2), row(g2), row(be2),
         row(qbias), row(abbias)], axis=0)

    # hoisted upper-triangular cumsum matrix (constant input)
    r = jnp.arange(hp)
    tri = (r[:, None] <= r[None, :]).astype(jnp.float32)

    return (w1.astype(jnp.float32), w2.astype(jnp.float32), wh, pslab, tri)


def _choose_tile(B, block_b):
    """Batch tile: multiple of 128 (lane-dense out block), >=4 grid steps when
    B is big enough (v7x megacore sharding + pipeline steady state)."""
    block_b = max(LANE, _round_up(block_b, LANE))
    target = _round_up(-(-B // 4), LANE)
    tb = max(LANE, min(block_b, target))
    b_pad = _round_up(max(B, tb), tb)
    return tb, b_pad


def ncqr_forward(x, packed, *, num_support, block_b=1024):
    w1, w2, wh, pslab, tri = packed
    B, num_inputs = x.shape
    h0 = w1.shape[1]
    h1 = w2.shape[1]
    hp = wh.shape[1]
    W = pslab.shape[1]
    S = num_support
    s_pad = _round_up(S, 8)

    tb, b_pad = _choose_tile(B, block_b)
    if b_pad != B:
        x = jnp.pad(x, ((0, b_pad - B), (0, 0)))
    grid = (b_pad // tb,)

    kernel = functools.partial(ncqr_kernel, num_support=S, s_pad=s_pad)

    out = pl.pallas_call(
        kernel,
        out_shape=jax.ShapeDtypeStruct((s_pad, b_pad), jnp.float32),
        grid_spec=pltpu.PrefetchScalarGridSpec(
            num_scalar_prefetch=0,
            grid=grid,
            in_specs=[
                pl.BlockSpec((tb, num_inputs), lambda i: (i, 0)),   # x (tiled)
                pl.BlockSpec((num_inputs, h0), lambda i: (0, 0)),   # w1 (resident)
                pl.BlockSpec((h0, h1), lambda i: (0, 0)),           # w2
                pl.BlockSpec((h1, hp), lambda i: (0, 0)),           # fused heads
                pl.BlockSpec((8, W), lambda i: (0, 0)),             # packed params
                pl.BlockSpec((hp, hp), lambda i: (0, 0)),           # tri (cumsum)
            ],
            out_specs=pl.BlockSpec((s_pad, tb), lambda i: (0, i)),  # (S, batch)
        ),
        compiler_params=pltpu.CompilerParams(
            dimension_semantics=("parallel",)),
    )(x, w1, w2, wh, pslab, tri)

    # back to the module's (B, S) layout
    return out[:S, :B].T


def _orthogonal(key, shape, gain):
    # deterministic orthogonal init (matches torch.nn.init.orthogonal_ semantics)
    rows, cols = shape
    a = jax.random.normal(key, (max(rows, cols), min(rows, cols)), jnp.float32)
    q, r = jnp.linalg.qr(a)
    q = q * jnp.sign(jnp.diag(r))
    if rows < cols:
        q = q.T
    return gain * q[:rows, :cols]


def make_params(key, num_inputs, hidden_size, num_support):
    h0, h1 = hidden_size
    std = jnp.sqrt(2.0)
    ks = jax.random.split(key, 5)
    # PyTorch Linear weight is [out, in]; store transposed [in, out] for the kernel.
    w1 = _orthogonal(ks[0], (h0, num_inputs), std).T
    w2 = _orthogonal(ks[1], (h1, h0), std).T
    wv = _orthogonal(ks[2], (num_support, h1), std).T
    wa = _orthogonal(ks[3], (1, h1), std).T
    wb = _orthogonal(ks[4], (1, h1), std).T
    b1 = jnp.zeros((1, h0), jnp.float32)
    b2 = jnp.zeros((1, h1), jnp.float32)
    bv = jnp.zeros((1, num_support), jnp.float32)
    ba = jnp.zeros((1, 1), jnp.float32)
    bb = jnp.zeros((1, 1), jnp.float32)
    g1 = jnp.ones((1, h0), jnp.float32)
    be1 = jnp.zeros((1, h0), jnp.float32)
    g2 = jnp.ones((1, h1), jnp.float32)
    be2 = jnp.zeros((1, h1), jnp.float32)
    return (w1, b1, g1, be1, w2, b2, g2, be2, wv, bv, wa, ba, wb, bb)


def ncqr_reference(x, params):
    (w1, b1, g1, be1, w2, b2, g2, be2, wv, bv, wa, ba, wb, bb) = params

    def ln(h, g, b):
        mu = jnp.mean(h, axis=-1, keepdims=True)
        var = jnp.mean((h - mu) ** 2, axis=-1, keepdims=True)
        return (h - mu) / jnp.sqrt(var + 1e-5) * g + b

    h = jax.nn.relu(ln(x @ w1 + b1, g1, be1))
    h = jax.nn.relu(ln(h @ w2 + b2, g2, be2))
    quant = jnp.cumsum(jax.nn.softmax(h @ wv + bv, axis=-1), axis=-1)
    a = jax.nn.relu(h @ wa + ba)
    b = h @ wb + bb
    return a * quant + b


if __name__ == "__main__":
    key = jax.random.PRNGKey(0)
    k_param, k_x = jax.random.split(key)

    num_inputs = 16
    hidden_size = (32, 32)
    num_support = 8
    batch = 8

    params = make_params(k_param, num_inputs, hidden_size, num_support)
    x = jax.random.normal(k_x, (batch, num_inputs), jnp.float32)

    packed = prepare_params(params)  # one-time host-side packing
    fwd = jax.jit(functools.partial(ncqr_forward, num_support=num_support))

    out = jax.block_until_ready(fwd(x, packed))

    ref = ncqr_reference(x, params)
    assert out.shape == (batch, num_support)
    err = float(jnp.max(jnp.abs(out - ref)))
    assert jnp.allclose(out, ref, atol=1e-4, rtol=1e-4), err

    print("KERNEL_OK")
</pallas_src>

<mosaic_0001>
module attributes {stable_mosaic.version = 11 : i64} {
  func.func @ncqr_kernel(%arg0: i32, %arg1: memref<128x16xf32, #tpu.memory_space<vmem>>, %arg2: memref<16x32xf32, #tpu.memory_space<vmem>>, %arg3: memref<32x32xf32, #tpu.memory_space<vmem>>, %arg4: memref<32x128xf32, #tpu.memory_space<vmem>>, %arg5: memref<8x128xf32, #tpu.memory_space<vmem>>, %arg6: memref<128x128xf32, #tpu.memory_space<vmem>>, %arg7: memref<8x128xf32, #tpu.memory_space<vmem>>) attributes {dimension_semantics = [#tpu.dimension_semantics<parallel>], iteration_bounds = array<i64: 1>, scalar_prefetch = 0 : i64, scratch_operands = 0 : i64, tpu.core_type = #tpu.core_type<tc>, window_params = [{transform_indices = @transform_0, window_bounds = array<i64: 128, 16>}, {pipeline_mode = #tpu.pipeline_mode<synchronous>, transform_indices = @transform_1, window_bounds = array<i64: 16, 32>}, {pipeline_mode = #tpu.pipeline_mode<synchronous>, transform_indices = @transform_2, window_bounds = array<i64: 32, 32>}, {pipeline_mode = #tpu.pipeline_mode<synchronous>, transform_indices = @transform_3, window_bounds = array<i64: 32, 128>}, {pipeline_mode = #tpu.pipeline_mode<synchronous>, transform_indices = @transform_4, window_bounds = array<i64: 8, 128>}, {pipeline_mode = #tpu.pipeline_mode<synchronous>, transform_indices = @transform_5, window_bounds = array<i64: 128, 128>}, {transform_indices = @transform_6, window_bounds = array<i64: 8, 128>}]} {
    %c0 = arith.constant 0 : index
    %c0_0 = arith.constant 0 : index
    %0 = vector.load %arg1[%c0, %c0_0] : memref<128x16xf32, #tpu.memory_space<vmem>>, vector<128x16xf32>
    %c0_1 = arith.constant 0 : index
    %c0_2 = arith.constant 0 : index
    %1 = vector.load %arg2[%c0_1, %c0_2] : memref<16x32xf32, #tpu.memory_space<vmem>>, vector<16x32xf32>
    %cst = arith.constant dense<0.000000e+00> : vector<128x32xf32>
    %2 = tpu.matmul %0, %1, %cst {dimension_numbers = #tpu.dot_dimension_numbers<[1], [0], [0], [1], [0, 0, 1, 1], [], []>} : vector<128x16xf32>, vector<16x32xf32>, vector<128x32xf32> -> vector<128x32xf32>
    %c0_3 = arith.constant 0 : index
    %c0_4 = arith.constant 0 : index
    %3 = vector.load %arg5[%c0_3, %c0_4] : memref<8x128xf32, #tpu.memory_space<vmem>>, vector<1x32xf32>
    %4 = vector.broadcast %3 : vector<1x32xf32> to vector<128x32xf32>
    %5 = arith.addf %2, %4 : vector<128x32xf32>
    %c1 = arith.constant 1 : index
    %c0_5 = arith.constant 0 : index
    %6 = vector.load %arg5[%c1, %c0_5] : memref<8x128xf32, #tpu.memory_space<vmem>>, vector<1x32xf32>
    %c2 = arith.constant 2 : index
    %c0_6 = arith.constant 0 : index
    %7 = vector.load %arg5[%c2, %c0_6] : memref<8x128xf32, #tpu.memory_space<vmem>>, vector<1x32xf32>
    %cst_7 = arith.constant dense<0.000000e+00> : vector<128xf32>
    %8 = vector.multi_reduction <add>, %5, %cst_7 [1] : vector<128x32xf32> to vector<128xf32>
    %9 = vector.shape_cast %8 : vector<128xf32> to vector<128x1xf32>
    %cst_8 = arith.constant 3.200000e+01 : f32
    %10 = vector.broadcast %cst_8 : f32 to vector<128x1xf32>
    %11 = arith.divf %9, %10 : vector<128x1xf32>
    %12 = vector.broadcast %11 : vector<128x1xf32> to vector<128x32xf32>
    %13 = arith.subf %5, %12 : vector<128x32xf32>
    %14 = arith.mulf %13, %13 : vector<128x32xf32>
    %cst_9 = arith.constant dense<0.000000e+00> : vector<128xf32>
    %15 = vector.multi_reduction <add>, %14, %cst_9 [1] : vector<128x32xf32> to vector<128xf32>
    %16 = vector.shape_cast %15 : vector<128xf32> to vector<128x1xf32>
    %cst_10 = arith.constant 3.200000e+01 : f32
    %17 = vector.broadcast %cst_10 : f32 to vector<128x1xf32>
    %18 = arith.divf %16, %17 : vector<128x1xf32>
    %cst_11 = arith.constant 9.99999974E-6 : f32
    %19 = vector.broadcast %cst_11 : f32 to vector<128x1xf32>
    %20 = arith.addf %18, %19 : vector<128x1xf32>
    %21 = math.rsqrt %20 : vector<128x1xf32>
    %22 = vector.broadcast %21 : vector<128x1xf32> to vector<128x32xf32>
    %23 = arith.mulf %13, %22 : vector<128x32xf32>
    %24 = vector.broadcast %6 : vector<1x32xf32> to vector<128x32xf32>
    %25 = arith.mulf %23, %24 : vector<128x32xf32>
    %26 = vector.broadcast %7 : vector<1x32xf32> to vector<128x32xf32>
    %27 = arith.addf %25, %26 : vector<128x32xf32>
    %cst_12 = arith.constant 0.000000e+00 : f32
    %28 = vector.broadcast %cst_12 : f32 to vector<128x32xf32>
    %29 = arith.maximumf %27, %28 : vector<128x32xf32>
    %c0_13 = arith.constant 0 : index
    %c0_14 = arith.constant 0 : index
    %30 = vector.load %arg3[%c0_13, %c0_14] : memref<32x32xf32, #tpu.memory_space<vmem>>, vector<32x32xf32>
    %cst_15 = arith.constant dense<0.000000e+00> : vector<128x32xf32>
    %31 = tpu.matmul %29, %30, %cst_15 {dimension_numbers = #tpu.dot_dimension_numbers<[1], [0], [0], [1], [0, 0, 1, 1], [], []>} : vector<128x32xf32>, vector<32x32xf32>, vector<128x32xf32> -> vector<128x32xf32>
    %c3 = arith.constant 3 : index
    %c0_16 = arith.constant 0 : index
    %32 = vector.load %arg5[%c3, %c0_16] : memref<8x128xf32, #tpu.memory_space<vmem>>, vector<1x32xf32>
    %33 = vector.broadcast %32 : vector<1x32xf32> to vector<128x32xf32>
    %34 = arith.addf %31, %33 : vector<128x32xf32>
    %c4 = arith.constant 4 : index
    %c0_17 = arith.constant 0 : index
    %35 = vector.load %arg5[%c4, %c0_17] : memref<8x128xf32, #tpu.memory_space<vmem>>, vector<1x32xf32>
    %c5 = arith.constant 5 : index
    %c0_18 = arith.constant 0 : index
    %36 = vector.load %arg5[%c5, %c0_18] : memref<8x128xf32, #tpu.memory_space<vmem>>, vector<1x32xf32>
    %cst_19 = arith.constant dense<0.000000e+00> : vector<128xf32>
    %37 = vector.multi_reduction <add>, %34, %cst_19 [1] : vector<128x32xf32> to vector<128xf32>
    %38 = vector.shape_cast %37 : vector<128xf32> to vector<128x1xf32>
    %cst_20 = arith.constant 3.200000e+01 : f32
    %39 = vector.broadcast %cst_20 : f32 to vector<128x1xf32>
    %40 = arith.divf %38, %39 : vector<128x1xf32>
    %41 = vector.broadcast %40 : vector<128x1xf32> to vector<128x32xf32>
    %42 = arith.subf %34, %41 : vector<128x32xf32>
    %43 = arith.mulf %42, %42 : vector<128x32xf32>
    %cst_21 = arith.constant dense<0.000000e+00> : vector<128xf32>
    %44 = vector.multi_reduction <add>, %43, %cst_21 [1] : vector<128x32xf32> to vector<128xf32>
    %45 = vector.shape_cast %44 : vector<128xf32> to vector<128x1xf32>
    %cst_22 = arith.constant 3.200000e+01 : f32
    %46 = vector.broadcast %cst_22 : f32 to vector<128x1xf32>
    %47 = arith.divf %45, %46 : vector<128x1xf32>
    %cst_23 = arith.constant 9.99999974E-6 : f32
    %48 = vector.broadcast %cst_23 : f32 to vector<128x1xf32>
    %49 = arith.addf %47, %48 : vector<128x1xf32>
    %50 = math.rsqrt %49 : vector<128x1xf32>
    %51 = vector.broadcast %50 : vector<128x1xf32> to vector<128x32xf32>
    %52 = arith.mulf %42, %51 : vector<128x32xf32>
    %53 = vector.broadcast %35 : vector<1x32xf32> to vector<128x32xf32>
    %54 = arith.mulf %52, %53 : vector<128x32xf32>
    %55 = vector.broadcast %36 : vector<1x32xf32> to vector<128x32xf32>
    %56 = arith.addf %54, %55 : vector<128x32xf32>
    %cst_24 = arith.constant 0.000000e+00 : f32
    %57 = vector.broadcast %cst_24 : f32 to vector<128x32xf32>
    %58 = arith.maximumf %56, %57 : vector<128x32xf32>
    %c0_25 = arith.constant 0 : index
    %c0_26 = arith.constant 0 : index
    %59 = vector.load %arg4[%c0_25, %c0_26] : memref<32x128xf32, #tpu.memory_space<vmem>>, vector<32x128xf32>
    %cst_27 = arith.constant dense<0.000000e+00> : vector<128x128xf32>
    %60 = tpu.matmul %58, %59, %cst_27 {dimension_numbers = #tpu.dot_dimension_numbers<[1], [0], [0], [1], [0, 0, 1, 1], [], []>} : vector<128x32xf32>, vector<32x128xf32>, vector<128x128xf32> -> vector<128x128xf32>
    %c6 = arith.constant 6 : index
    %c0_28 = arith.constant 0 : index
    %61 = vector.load %arg5[%c6, %c0_28] : memref<8x128xf32, #tpu.memory_space<vmem>>, vector<1x128xf32>
    %62 = vector.broadcast %61 : vector<1x128xf32> to vector<128x128xf32>
    %63 = arith.addf %60, %62 : vector<128x128xf32>
    %cst_29 = arith.constant dense<0xFF800000> : vector<128xf32>
    %64 = vector.multi_reduction <maximumf>, %63, %cst_29 [1] : vector<128x128xf32> to vector<128xf32>
    %65 = vector.shape_cast %64 : vector<128xf32> to vector<128x1xf32>
    %66 = vector.broadcast %65 : vector<128x1xf32> to vector<128x128xf32>
    %67 = arith.subf %63, %66 : vector<128x128xf32>
    %68 = math.exp %67 : vector<128x128xf32>
    %c0_30 = arith.constant 0 : index
    %c0_31 = arith.constant 0 : index
    %69 = vector.load %arg6[%c0_30, %c0_31] : memref<128x128xf32, #tpu.memory_space<vmem>>, vector<128x128xf32>
    %cst_32 = arith.constant dense<0.000000e+00> : vector<128x128xf32>
    %70 = tpu.matmul %68, %69, %cst_32 {dimension_numbers = #tpu.dot_dimension_numbers<[1], [0], [0], [1], [0, 0, 1, 1], [], []>} : vector<128x128xf32>, vector<128x128xf32>, vector<128x128xf32> -> vector<128x128xf32>
    %71 = vector.extract_strided_slice %70 {offsets = [0, 127], sizes = [128, 1], strides = [1, 1]} : vector<128x128xf32> to vector<128x1xf32>
    %72 = tpu.reciprocal %71 : vector<128x1xf32> -> vector<128x1xf32>
    %73 = vector.extract_strided_slice %60 {offsets = [0, 8], sizes = [128, 1], strides = [1, 1]} : vector<128x128xf32> to vector<128x1xf32>
    %c7 = arith.constant 7 : index
    %c8 = arith.constant 8 : index
    %74 = vector.load %arg5[%c7, %c8] : memref<8x128xf32, #tpu.memory_space<vmem>>, vector<1x1xf32>
    %75 = vector.broadcast %74 : vector<1x1xf32> to vector<128x1xf32>
    %76 = arith.addf %73, %75 : vector<128x1xf32>
    %cst_33 = arith.constant 0.000000e+00 : f32
    %77 = vector.broadcast %cst_33 : f32 to vector<128x1xf32>
    %78 = arith.maximumf %76, %77 : vector<128x1xf32>
    %79 = vector.extract_strided_slice %60 {offsets = [0, 9], sizes = [128, 1], strides = [1, 1]} : vector<128x128xf32> to vector<128x1xf32>
    %c7_34 = arith.constant 7 : index
    %c9 = arith.constant 9 : index
    %80 = vector.load %arg5[%c7_34, %c9] : memref<8x128xf32, #tpu.memory_space<vmem>>, vector<1x1xf32>
    %81 = vector.broadcast %80 : vector<1x1xf32> to vector<128x1xf32>
    %82 = arith.addf %79, %81 : vector<128x1xf32>
    %83 = arith.mulf %78, %72 : vector<128x1xf32>
    %84 = vector.broadcast %83 : vector<128x1xf32> to vector<128x128xf32>
    %85 = arith.mulf %84, %70 : vector<128x128xf32>
    %86 = vector.broadcast %82 : vector<128x1xf32> to vector<128x128xf32>
    %87 = arith.addf %85, %86 : vector<128x128xf32>
    %88 = tpu.transpose %87, [1, 0] : vector<128x128xf32> -> vector<128x128xf32>
    %89 = vector.extract_strided_slice %88 {offsets = [0, 0], sizes = [8, 128], strides = [1, 1]} : vector<128x128xf32> to vector<8x128xf32>
    %c0_35 = arith.constant 0 : index
    %c0_36 = arith.constant 0 : index
    %90 = vector.load %arg7[%c0_35, %c0_36] : memref<8x128xf32, #tpu.memory_space<vmem>>, vector<8x128xf32>
    tpu.vector_store %arg7[%c0_35, %c0_36], %89 {strides = array<i32>} : memref<8x128xf32, #tpu.memory_space<vmem>>, vector<8x128xf32>,
    return
  }
  func.func @transform_0(%arg0: i32) -> (i32, i32) {
    %c0_i32 = arith.constant 0 : i32
    %c0_i32_0 = arith.constant 0 : i32
    return %arg0, %c0_i32 : i32, i32
  }
  func.func @transform_1(%arg0: i32) -> (i32, i32) {
    %c0_i32 = arith.constant 0 : i32
    %c0_i32_0 = arith.constant 0 : i32
    %c0_i32_1 = arith.constant 0 : i32
    return %c0_i32, %c0_i32_0 : i32, i32
  }
  func.func @transform_2(%arg0: i32) -> (i32, i32) {
    %c0_i32 = arith.constant 0 : i32
    %c0_i32_0 = arith.constant 0 : i32
    %c0_i32_1 = arith.constant 0 : i32
    return %c0_i32, %c0_i32_0 : i32, i32
  }
  func.func @transform_3(%arg0: i32) -> (i32, i32) {
    %c0_i32 = arith.constant 0 : i32
    %c0_i32_0 = arith.constant 0 : i32
    %c0_i32_1 = arith.constant 0 : i32
    return %c0_i32, %c0_i32_0 : i32, i32
  }
  func.func @transform_4(%arg0: i32) -> (i32, i32) {
    %c0_i32 = arith.constant 0 : i32
    %c0_i32_0 = arith.constant 0 : i32
    %c0_i32_1 = arith.constant 0 : i32
    return %c0_i32, %c0_i32_0 : i32, i32
  }
  func.func @transform_5(%arg0: i32) -> (i32, i32) {
    %c0_i32 = arith.constant 0 : i32
    %c0_i32_0 = arith.constant 0 : i32
    %c0_i32_1 = arith.constant 0 : i32
    return %c0_i32, %c0_i32_0 : i32, i32
  }
  func.func @transform_6(%arg0: i32) -> (i32, i32) {
    %c0_i32 = arith.constant 0 : i32
    %c0_i32_0 = arith.constant 0 : i32
    return %c0_i32, %arg0 : i32, i32
  }
}

</mosaic_0001>

<llo_original>
// kernel: ncqr_forward.1
$region0: #{ncqr_forward.1}
  #allocation0 [shape = 'u32[]', space=smem, size = 0x4, offset = 0x4, fixed_abs, tag = 'smem constant byte address 0x4 - core index']
  #allocation1 [shape = 'u32[144,128]{1,0:T(1,128)}', space=vmem, size = 0x12000, scoped, tag = 'internal scratch']
  %s0 = inlined_call_operand.vmem [shape: f32[128,16], index: 0, kind: input, shape index: {}]
  %s1 = inlined_call_operand.vmem [shape: f32[16,32], index: 1, kind: input, shape index: {}]
  %s2 = inlined_call_operand.hbm [shape: f32[32,32], index: 2, kind: input, shape index: {}]
  %s3 = inlined_call_operand.hbm [shape: f32[32,128], index: 3, kind: input, shape index: {}]
  %s4 = inlined_call_operand.hbm [shape: f32[8,128], index: 4, kind: input, shape index: {}]
  %s5 = inlined_call_operand.vmem [shape: f32[128,128], index: 5, kind: input, shape index: {}]
  %s6 = inlined_call_operand.vmem [shape: f32[8,128], index: 6, kind: output, shape index: {}]
  %s7 = sld [smem:[#allocation0]]
  $region46: #{ncqr_forward.1} parent=0
    _
  %s9 = ssub.s32 1, %s7
  %s10 = scalar_select 0, %s9, %s7
  $region1: #{ncqr_forward.1} parent=0
    #allocation2 [shape = 'u8[16384]{0}', space=vmem, size = 0x4000, scoped, tag = 'input window, operand 2, single buffered']
    #allocation3 [shape = 's32[1]{0}', space=sflag, size = 0x4, scoped, tag = 'scoped memory for ncqr_forward.1']
    #allocation4 [shape = 'u8[16384]{0}', space=vmem, size = 0x4000, scoped, tag = 'input window, operand 3, single buffered']
    #allocation5 [shape = 's32[1]{0}', space=sflag, size = 0x4, scoped, tag = 'scoped memory for ncqr_forward.1']
    #allocation6 [shape = 'u8[4096]{0}', space=vmem, size = 0x1000, scoped, tag = 'input window, operand 4, single buffered']
    %11 = vsyncpa [#allocation3], 0
    %12 = vsyncpa [#allocation5], 0
    // Predicated region
    $region2: #{ncqr_forward.1} parent=1 // pred_check
      _
    $region3: #{ncqr_forward.1} parent=1 // pred_check_branch
      %14 = sbr.rel (0) target = $region5
    $region4: #{ncqr_forward.1} parent=1 // pred_region
      _
    $region5: #{ncqr_forward.1} parent=1 // pred_fallthru
      _
    // Predicated region
    $region6: #{ncqr_forward.1} parent=1 // pred_check
      _
    $region7: #{ncqr_forward.1} parent=1 // pred_check_branch
      %16 = sbr.rel (0) target = $region9
    $region8: #{ncqr_forward.1} parent=1 // pred_region
      _
    $region9: #{ncqr_forward.1} parent=1 // pred_fallthru
      _
    // Predicated region
    $region10: #{ncqr_forward.1} parent=1 // pred_check
      _
    $region11: #{ncqr_forward.1} parent=1 // pred_check_branch
      %18 = sbr.rel (0) target = $region13
    $region12: #{ncqr_forward.1} parent=1 // pred_region
      %s20 = ssub.s32 512, 512
      %21 = vsyncadd [#allocation3], %s20
      %s22 = sshll.u32 [#allocation2], 4
      %s23 = int_to_ptr.vmem [resolvable:$true] %s22
      %28 = dma.hbm_to_vmem [thread:$0]  %s2, 512, %s23, [#allocation3], 128, 128, 8
    $region13: #{ncqr_forward.1} parent=1 // pred_fallthru
      _
    // Predicated region
    $region14: #{ncqr_forward.1} parent=1 // pred_check
      _
    $region15: #{ncqr_forward.1} parent=1 // pred_check_branch
      %30 = sbr.rel (0) target = $region17
    $region16: #{ncqr_forward.1} parent=1 // pred_region
      %s32 = ssub.s32 512, 512
      %33 = vsyncadd [#allocation5], %s32
      %s34 = sshll.u32 [#allocation4], 4
      %s35 = int_to_ptr.vmem [resolvable:$true] %s34
      %40 = dma.hbm_to_vmem [thread:$0]  %s3, 512, %s35, [#allocation5], 128, 128, 8
    $region17: #{ncqr_forward.1} parent=1 // pred_fallthru
      _
    // Predicated region
    $region18: #{ncqr_forward.1} parent=1 // pred_check
      _
    $region19: #{ncqr_forward.1} parent=1 // pred_check_branch
      %42 = sbr.rel (0) target = $region21
    $region20: #{ncqr_forward.1} parent=1 // pred_region
      %s44 = ssub.s32 128, 128
      %45 = vsyncadd [#allocation5], %s44
      %s47 = sshll.u32 [#allocation6], 4
      %s48 = int_to_ptr.vmem [resolvable:$true] %s47
      %50 = dma.hbm_to_vmem [thread:$0]  %s4, 128, %s48, [#allocation5]
    $region21: #{ncqr_forward.1} parent=1 // pred_fallthru
      _
    // Predicated region
    $region22: #{ncqr_forward.1} parent=1 // pred_check
      _
    $region23: #{ncqr_forward.1} parent=1 // pred_check_branch
      %52 = sbr.rel (0) target = $region25
    $region24: #{ncqr_forward.1} parent=1 // pred_region
      _
    $region25: #{ncqr_forward.1} parent=1 // pred_fallthru
      _
    // Predicated region
    $region26: #{ncqr_forward.1} parent=1 // pred_check
      _
    $region27: #{ncqr_forward.1} parent=1 // pred_check_branch
      %54 = sbr.rel (0) target = $region29
    $region28: #{ncqr_forward.1} parent=1 // pred_region
      %55 = dma.done [#allocation3], 512
    $region29: #{ncqr_forward.1} parent=1 // pred_fallthru
      _
    // Predicated region
    $region30: #{ncqr_forward.1} parent=1 // pred_check
      _
    $region31: #{ncqr_forward.1} parent=1 // pred_check_branch
      %57 = sbr.rel (0) target = $region33
    $region32: #{ncqr_forward.1} parent=1 // pred_region
      %58 = dma.done [#allocation5], 512
    $region33: #{ncqr_forward.1} parent=1 // pred_fallthru
      _
    // Predicated region
    $region34: #{ncqr_forward.1} parent=1 // pred_check
      _
    $region35: #{ncqr_forward.1} parent=1 // pred_check_branch
      %60 = sbr.rel (0) target = $region37
    $region36: #{ncqr_forward.1} parent=1 // pred_region
      %61 = dma.done [#allocation5], 128
    $region37: #{ncqr_forward.1} parent=1 // pred_fallthru
      _
    %v62 = vld [vmem:[%s0] sm:$0xff]
    %v63 = vld [vmem:[%s0 + $0x8] sm:$0xff]
    %v64 = vld [vmem:[%s0 + $0x10] sm:$0xff]
    %v65 = vld [vmem:[%s0 + $0x18] sm:$0xff]
    %v66 = vld [vmem:[%s0 + $0x20] sm:$0xff]
    %v67 = vld [vmem:[%s0 + $0x28] sm:$0xff]
    %v68 = vld [vmem:[%s0 + $0x30] sm:$0xff]
    %v69 = vld [vmem:[%s0 + $0x38] sm:$0xff]
    %v70 = vld [vmem:[%s0 + $0x40] sm:$0xff]
    %v71 = vld [vmem:[%s0 + $0x48] sm:$0xff]
    %v72 = vld [vmem:[%s0 + $0x50] sm:$0xff]
    %v73 = vld [vmem:[%s0 + $0x58] sm:$0xff]
    %v74 = vld [vmem:[%s0 + $0x60] sm:$0xff]
    %v75 = vld [vmem:[%s0 + $0x68] sm:$0xff]
    %v76 = vld [vmem:[%s0 + $0x70] sm:$0xff]
    %v77 = vld [vmem:[%s0 + $0x78] sm:$0xff]
    %v78 = vld [vmem:[%s1] sm:$0xff]
    %v79 = vld [vmem:[%s1 + $0x8] sm:$0xff]
    %v80 = vld [vmem:[#allocation6] sm:$0x1]
    %v81 = vlaneseq
    %v82 = vshrl.u32 %v81, 7
    %v83 = vsub.s32 0, %v82
    %v84 = vrot.slane %v80, %v83
    %vm85 = vcmask 130048
    %v87 = vsel %vm85, %v62, 0
    %v90 = vsel %vm85, %v63, 0
    %v93 = vsel %vm85, %v64, 0
    %v96 = vsel %vm85, %v65, 0
    %v99 = vsel %vm85, %v66, 0
    %v102 = vsel %vm85, %v67, 0
    %v105 = vsel %vm85, %v68, 0
    %v108 = vsel %vm85, %v69, 0
    %v111 = vsel %vm85, %v70, 0
    %v114 = vsel %vm85, %v71, 0
    %v117 = vsel %vm85, %v72, 0
    %v120 = vsel %vm85, %v73, 0
    %v123 = vsel %vm85, %v74, 0
    %v126 = vsel %vm85, %v75, 0
    %v129 = vsel %vm85, %v76, 0
    %v132 = vsel %vm85, %v77, 0
    %134 = vmatprep.subr.mxu0 0.0
    %135 = vmatpush1.msra.mxu0 0.0
    %136 = vmatprep.subr.mxu0 0.0
    %137 = vmatpush1.msra.mxu0 0.0
    %138 = vmatprep.subr.mxu0 0.0
    %139 = vmatpush1.msra.mxu0 0.0
    %140 = vmatprep.subr.mxu0 0.0
    %141 = vmatpush1.msra.mxu0 0.0
    %142 = vmatprep.subr.mxu0 0.0
    %143 = vmatpush1.msra.mxu0 0.0
    %144 = vmatprep.subr.mxu0 0.0
    %145 = vmatpush1.msra.mxu0 0.0
    %146 = vmatprep.subr.mxu0 0.0
    %147 = vmatpush1.msra.mxu0 0.0
    %148 = vmatprep.subr.mxu0 0.0
    %149 = vmatpush1.msra.mxu0 0.0
    %150 = vmatprep.subr.mxu0 0.0
    %151 = vmatpush1.msra.mxu0 0.0
    %152 = vmatprep.subr.mxu0 0.0
    %153 = vmatpush1.msra.mxu0 0.0
    %154 = vmatprep.subr.mxu0 0.0
    %155 = vmatpush1.msra.mxu0 0.0
    %156 = vmatprep.subr.mxu0 0.0
    %157 = vmatpush1.msra.mxu0 0.0
    %158 = vmatprep.subr.mxu0 0.0
    %159 = vmatpush1.msra.mxu0 0.0
    %160 = vmatprep.subr.mxu0 0.0
    %161 = vmatpush1.msra.mxu0 0.0
    %162 = vmatprep.subr.mxu0 0.0
    %163 = vmatpush1.msra.mxu0 %v79
    %164 = vmatprep.subr.mxu0 0.0
    %165 = vmatpush1.msra.mxu0 %v78
    %166 = vmatprep.subr.mxu0 0.0
    %167 = vmatpush2.msra.mxu0 0.0
    %168 = vmatprep.subr.mxu0 0.0
    %169 = vmatpush2.msra.mxu0 0.0
    %170 = vmatprep.subr.mxu0 0.0
    %171 = vmatpush2.msra.mxu0 0.0
    %172 = vmatprep.subr.mxu0 0.0
    %173 = vmatpush2.msra.mxu0 0.0
    %174 = vmatprep.subr.mxu0 0.0
    %175 = vmatpush2.msra.mxu0 0.0
    %176 = vmatprep.subr.mxu0 0.0
    %177 = vmatpush2.msra.mxu0 0.0
    %178 = vmatprep.subr.mxu0 0.0
    %179 = vmatpush2.msra.mxu0 0.0
    %180 = vmatprep.subr.mxu0 0.0
    %181 = vmatpush2.msra.mxu0 0.0
    %182 = vmatprep.subr.mxu0 0.0
    %183 = vmatpush2.msra.mxu0 0.0
    %184 = vmatprep.subr.mxu0 0.0
    %185 = vmatpush2.msra.mxu0 0.0
    %186 = vmatprep.subr.mxu0 0.0
    %187 = vmatpush2.msra.mxu0 0.0
    %188 = vmatprep.subr.mxu0 0.0
    %189 = vmatpush2.msra.mxu0 0.0
    %190 = vmatprep.subr.mxu0 0.0
    %191 = vmatpush2.msra.mxu0 0.0
    %192 = vmatprep.subr.mxu0 0.0
    %193 = vmatpush2.msra.mxu0 0.0
    %194 = vmatprep.subr.mxu0 0.0
    %195 = vmatpush2.msra.mxu0 0.0
    %196 = vmatprep.subr.mxu0 0.0
    %197 = vmatpush2.msra.mxu0 0.0
    %198 = vmatprep.mubr.f32.mxu0 0.0
    %199 = vmatmul.mubr.f32.gmra.mxu0 %v87
    %v200 = vpop.f32.mrf.mxu0
    %v201 = vadd.f32 %v84, %v200
    %v202 = vpop.f32.mrf.mxu0
    %203 = vmatprep.mubr.f32.mxu0 0.0
    %204 = vmatmul.mubr.f32.gmra.mxu0 %v90
    %v205 = vpop.f32.mrf.mxu0
    %v206 = vadd.f32 %v84, %v205
    %v207 = vpop.f32.mrf.mxu0
    %208 = vmatprep.mubr.f32.mxu0 0.0
    %209 = vmatmul.mubr.f32.gmra.mxu0 %v93
    %v210 = vpop.f32.mrf.mxu0
    %v211 = vadd.f32 %v84, %v210
    %v212 = vpop.f32.mrf.mxu0
    %213 = vmatprep.mubr.f32.mxu0 0.0
    %214 = vmatmul.mubr.f32.gmra.mxu0 %v96
    %v215 = vpop.f32.mrf.mxu0
    %v216 = vadd.f32 %v84, %v215
    %v217 = vpop.f32.mrf.mxu0
    %218 = vmatprep.mubr.f32.mxu0 0.0
    %219 = vmatmul.mubr.f32.gmra.mxu0 %v99
    %v220 = vpop.f32.mrf.mxu0
    %v221 = vadd.f32 %v84, %v220
    %v222 = vpop.f32.mrf.mxu0
    %223 = vmatprep.mubr.f32.mxu0 0.0
    %224 = vmatmul.mubr.f32.gmra.mxu0 %v102
    %v225 = vpop.f32.mrf.mxu0
    %v226 = vadd.f32 %v84, %v225
    %v227 = vpop.f32.mrf.mxu0
    %228 = vmatprep.mubr.f32.mxu0 0.0
    %229 = vmatmul.mubr.f32.gmra.mxu0 %v105
    %v230 = vpop.f32.mrf.mxu0
    %v231 = vadd.f32 %v84, %v230
    %v232 = vpop.f32.mrf.mxu0
    %233 = vmatprep.mubr.f32.mxu0 0.0
    %234 = vmatmul.mubr.f32.gmra.mxu0 %v108
    %v235 = vpop.f32.mrf.mxu0
    %v236 = vadd.f32 %v84, %v235
    %v237 = vpop.f32.mrf.mxu0
    %238 = vmatprep.mubr.f32.mxu0 0.0
    %239 = vmatmul.mubr.f32.gmra.mxu0 %v111
    %v240 = vpop.f32.mrf.mxu0
    %v241 = vadd.f32 %v84, %v240
    %v242 = vpop.f32.mrf.mxu0
    %243 = vmatprep.mubr.f32.mxu0 0.0
    %244 = vmatmul.mubr.f32.gmra.mxu0 %v114
    %v245 = vpop.f32.mrf.mxu0
    %v246 = vadd.f32 %v84, %v245
    %v247 = vpop.f32.mrf.mxu0
    %248 = vmatprep.mubr.f32.mxu0 0.0
    %249 = vmatmul.mubr.f32.gmra.mxu0 %v117
    %v250 = vpop.f32.mrf.mxu0
    %v251 = vadd.f32 %v84, %v250
    %v252 = vpop.f32.mrf.mxu0
    %253 = vmatprep.mubr.f32.mxu0 0.0
    %254 = vmatmul.mubr.f32.gmra.mxu0 %v120
    %v255 = vpop.f32.mrf.mxu0
    %v256 = vadd.f32 %v84, %v255
    %v257 = vpop.f32.mrf.mxu0
    %258 = vmatprep.mubr.f32.mxu0 0.0
    %259 = vmatmul.mubr.f32.gmra.mxu0 %v123
    %v260 = vpop.f32.mrf.mxu0
    %v261 = vadd.f32 %v84, %v260
    %v262 = vpop.f32.mrf.mxu0
    %263 = vmatprep.mubr.f32.mxu0 0.0
    %264 = vmatmul.mubr.f32.gmra.mxu0 %v126
    %v265 = vpop.f32.mrf.mxu0
    %v266 = vadd.f32 %v84, %v265
    %v267 = vpop.f32.mrf.mxu0
    %268 = vmatprep.mubr.f32.mxu0 0.0
    %269 = vmatmul.mubr.f32.gmra.mxu0 %v129
    %v270 = vpop.f32.mrf.mxu0
    %v271 = vadd.f32 %v84, %v270
    %v272 = vpop.f32.mrf.mxu0
    %273 = vmatprep.mubr.f32.mxu0 0.0
    %274 = vmatmul.mubr.f32.gmra.mxu0 %v132
    %v275 = vpop.f32.mrf.mxu0
    %v276 = vadd.f32 %v84, %v275
    %v277 = vpop.f32.mrf.mxu0
    %278 = vdwg.mxu0
    %v279 = vld [vmem:[#allocation6 + $0x1] sm:$0x1]
    %v280 = vld [vmem:[#allocation6 + $0x2] sm:$0x1]
    %vm281 = vcmask 261120
    %v282 = vsel %vm281, %v201, 0.0
    %283 = vadd.xlane.f32.xlu0 %v282
    %v284 = vpop.xlane.xlu0 %283
    %v285 = vsel %vm281, %v206, 0.0
    %286 = vadd.xlane.f32.xlu0 %v285
    %v287 = vpop.xlane.xlu0 %286
    %v288 = vsel %vm281, %v211, 0.0
    %289 = vadd.xlane.f32.xlu0 %v288
    %v290 = vpop.xlane.xlu0 %289
    %v291 = vsel %vm281, %v216, 0.0
    %292 = vadd.xlane.f32.xlu0 %v291
    %v293 = vpop.xlane.xlu0 %292
    %v294 = vsel %vm281, %v221, 0.0
    %295 = vadd.xlane.f32.xlu0 %v294
    %v296 = vpop.xlane.xlu0 %295
    %v297 = vsel %vm281, %v226, 0.0
    %298 = vadd.xlane.f32.xlu0 %v297
    %v299 = vpop.xlane.xlu0 %298
    %v300 = vsel %vm281, %v231, 0.0
    %301 = vadd.xlane.f32.xlu0 %v300
    %v302 = vpop.xlane.xlu0 %301
    %v303 = vsel %vm281, %v236, 0.0
    %304 = vadd.xlane.f32.xlu0 %v303
    %v305 = vpop.xlane.xlu0 %304
    %v306 = vsel %vm281, %v241, 0.0
    %307 = vadd.xlane.f32.xlu0 %v306
    %v308 = vpop.xlane.xlu0 %307
    %v309 = vsel %vm281, %v246, 0.0
    %310 = vadd.xlane.f32.xlu0 %v309
    %v311 = vpop.xlane.xlu0 %310
    %v312 = vsel %vm281, %v251, 0.0
    %313 = vadd.xlane.f32.xlu0 %v312
    %v314 = vpop.xlane.xlu0 %313
    %v315 = vsel %vm281, %v256, 0.0
    %316 = vadd.xlane.f32.xlu0 %v315
    %v317 = vpop.xlane.xlu0 %316
    %v318 = vsel %vm281, %v261, 0.0
    %319 = vadd.xlane.f32.xlu0 %v318
    %v320 = vpop.xlane.xlu0 %319
    %v321 = vsel %vm281, %v266, 0.0
    %322 = vadd.xlane.f32.xlu0 %v321
    %v323 = vpop.xlane.xlu0 %322
    %v324 = vsel %vm281, %v271, 0.0
    %325 = vadd.xlane.f32.xlu0 %v324
    %v326 = vpop.xlane.xlu0 %325
    %v327 = vsel %vm281, %v276, 0.0
    %328 = vadd.xlane.f32.xlu0 %v327
    %v329 = vpop.xlane.xlu0 %328
    %v330 = vrcp.pop 32.0
    %v331 = vmul.f32 %v284, %v330
    %v332 = vmul.f32 %v287, %v330
    %v333 = vmul.f32 %v290, %v330
    %v334 = vmul.f32 %v293, %v330
    %v335 = vmul.f32 %v296, %v330
    %v336 = vmul.f32 %v299, %v330
    %v337 = vmul.f32 %v302, %v330
    %v338 = vmul.f32 %v305, %v330
    %v339 = vmul.f32 %v308, %v330
    %v340 = vmul.f32 %v311, %v330
    %v341 = vmul.f32 %v314, %v330
    %v342 = vmul.f32 %v317, %v330
    %v343 = vmul.f32 %v320, %v330
    %v344 = vmul.f32 %v323, %v330
    %v345 = vmul.f32 %v326, %v330
    %v346 = vmul.f32 %v329, %v330
    %v347 = vsub.f32 %v201, %v331
    %v348 = vsub.f32 %v206, %v332
    %v349 = vsub.f32 %v211, %v333
    %v350 = vsub.f32 %v216, %v334
    %v351 = vsub.f32 %v221, %v335
    %v352 = vsub.f32 %v226, %v336
    %v353 = vsub.f32 %v231, %v337
    %v354 = vsub.f32 %v236, %v338
    %v355 = vsub.f32 %v241, %v339
    %v356 = vsub.f32 %v246, %v340
    %v357 = vsub.f32 %v251, %v341
    %v358 = vsub.f32 %v256, %v342
    %v359 = vsub.f32 %v261, %v343
    %v360 = vsub.f32 %v266, %v344
    %v361 = vsub.f32 %v271, %v345
    %v362 = vsub.f32 %v276, %v346
    %v363 = vmul.f32 %v347, %v347
    %v364 = vmul.f32 %v348, %v348
    %v365 = vmul.f32 %v349, %v349
    %v366 = vmul.f32 %v350, %v350
    %v367 = vmul.f32 %v351, %v351
    %v368 = vmul.f32 %v352, %v352
    %v369 = vmul.f32 %v353, %v353
    %v370 = vmul.f32 %v354, %v354
    %v371 = vmul.f32 %v355, %v355
    %v372 = vmul.f32 %v356, %v356
    %v373 = vmul.f32 %v357, %v357
    %v374 = vmul.f32 %v358, %v358
    %v375 = vmul.f32 %v359, %v359
    %v376 = vmul.f32 %v360, %v360
    %v377 = vmul.f32 %v361, %v361
    %v378 = vmul.f32 %v362, %v362
    %v379 = vsel %vm281, %v363, 0.0
    %380 = vadd.xlane.f32.xlu0 %v379
    %v381 = vpop.xlane.xlu0 %380
    %v382 = vsel %vm281, %v364, 0.0
    %383 = vadd.xlane.f32.xlu0 %v382
    %v384 = vpop.xlane.xlu0 %383
    %v385 = vsel %vm281, %v365, 0.0
    %386 = vadd.xlane.f32.xlu0 %v385
    %v387 = vpop.xlane.xlu0 %386
    %v388 = vsel %vm281, %v366, 0.0
    %389 = vadd.xlane.f32.xlu0 %v388
    %v390 = vpop.xlane.xlu0 %389
    %v391 = vsel %vm281, %v367, 0.0
    %392 = vadd.xlane.f32.xlu0 %v391
    %v393 = vpop.xlane.xlu0 %392
    %v394 = vsel %vm281, %v368, 0.0
    %395 = vadd.xlane.f32.xlu0 %v394
    %v396 = vpop.xlane.xlu0 %395
    %v397 = vsel %vm281, %v369, 0.0
    %398 = vadd.xlane.f32.xlu0 %v397
    %v399 = vpop.xlane.xlu0 %398
    %v400 = vsel %vm281, %v370, 0.0
    %401 = vadd.xlane.f32.xlu0 %v400
    %v402 = vpop.xlane.xlu0 %401
    %v403 = vsel %vm281, %v371, 0.0
    %404 = vadd.xlane.f32.xlu0 %v403
    %v405 = vpop.xlane.xlu0 %404
    %v406 = vsel %vm281, %v372, 0.0
    %407 = vadd.xlane.f32.xlu0 %v406
    %v408 = vpop.xlane.xlu0 %407
    %v409 = vsel %vm281, %v373, 0.0
    %410 = vadd.xlane.f32.xlu0 %v409
    %v411 = vpop.xlane.xlu0 %410
    %v412 = vsel %vm281, %v374, 0.0
    %413 = vadd.xlane.f32.xlu0 %v412
    %v414 = vpop.xlane.xlu0 %413
    %v415 = vsel %vm281, %v375, 0.0
    %416 = vadd.xlane.f32.xlu0 %v415
    %v417 = vpop.xlane.xlu0 %416
    %v418 = vsel %vm281, %v376, 0.0
    %419 = vadd.xlane.f32.xlu0 %v418
    %v420 = vpop.xlane.xlu0 %419
    %v421 = vsel %vm281, %v377, 0.0
    %422 = vadd.xlane.f32.xlu0 %v421
    %v423 = vpop.xlane.xlu0 %422
    %v424 = vsel %vm281, %v378, 0.0
    %425 = vadd.xlane.f32.xlu0 %v424
    %v426 = vpop.xlane.xlu0 %425
    %v427 = vmul.f32 %v381, %v330
    %v428 = vmul.f32 %v384, %v330
    %v429 = vmul.f32 %v387, %v330
    %v430 = vmul.f32 %v390, %v330
    %v431 = vmul.f32 %v393, %v330
    %v432 = vmul.f32 %v396, %v330
    %v433 = vmul.f32 %v399, %v330
    %v434 = vmul.f32 %v402, %v330
    %v435 = vmul.f32 %v405, %v330
    %v436 = vmul.f32 %v408, %v330
    %v437 = vmul.f32 %v411, %v330
    %v438 = vmul.f32 %v414, %v330
    %v439 = vmul.f32 %v417, %v330
    %v440 = vmul.f32 %v420, %v330
    %v441 = vmul.f32 %v423, %v330
    %v442 = vmul.f32 %v426, %v330
    %v443 = vadd.f32 %v427, 1e-05
    %v444 = vadd.f32 %v428, 1e-05
    %v445 = vadd.f32 %v429, 1e-05
    %v446 = vadd.f32 %v430, 1e-05
    %v447 = vadd.f32 %v431, 1e-05
    %v448 = vadd.f32 %v432, 1e-05
    %v449 = vadd.f32 %v433, 1e-05
    %v450 = vadd.f32 %v434, 1e-05
    %v451 = vadd.f32 %v435, 1e-05
    %v452 = vadd.f32 %v436, 1e-05
    %v453 = vadd.f32 %v437, 1e-05
    %v454 = vadd.f32 %v438, 1e-05
    %v455 = vadd.f32 %v439, 1e-05
    %v456 = vadd.f32 %v440, 1e-05
    %v457 = vadd.f32 %v441, 1e-05
    %v458 = vadd.f32 %v442, 1e-05
    %v459 = vrsqrt.pop %v443
    %v460 = vrsqrt.pop %v444
    %v461 = vrsqrt.pop %v445
    %v462 = vrsqrt.pop %v446
    %v463 = vrsqrt.pop %v447
    %v464 = vrsqrt.pop %v448
    %v465 = vrsqrt.pop %v449
    %v466 = vrsqrt.pop %v450
    %v467 = vrsqrt.pop %v451
    %v468 = vrsqrt.pop %v452
    %v469 = vrsqrt.pop %v453
    %v470 = vrsqrt.pop %v454
    %v471 = vrsqrt.pop %v455
    %v472 = vrsqrt.pop %v456
    %v473 = vrsqrt.pop %v457
    %v474 = vrsqrt.pop %v458
    %v475 = vmul.f32 %v347, %v459
    %v476 = vmul.f32 %v348, %v460
    %v477 = vmul.f32 %v349, %v461
    %v478 = vmul.f32 %v350, %v462
    %v479 = vmul.f32 %v351, %v463
    %v480 = vmul.f32 %v352, %v464
    %v481 = vmul.f32 %v353, %v465
    %v482 = vmul.f32 %v354, %v466
    %v483 = vmul.f32 %v355, %v467
    %v484 = vmul.f32 %v356, %v468
    %v485 = vmul.f32 %v357, %v469
    %v486 = vmul.f32 %v358, %v470
    %v487 = vmul.f32 %v359, %v471
    %v488 = vmul.f32 %v360, %v472
    %v489 = vmul.f32 %v361, %v473
    %v490 = vmul.f32 %v362, %v474
    %v491 = vlaneseq
    %v492 = vshrl.u32 %v491, 7
    %v493 = vsub.s32 0, %v492
    %v494 = vrot.slane %v279, %v493
    %v495 = vmul.f32 %v475, %v494
    %v496 = vmul.f32 %v476, %v494
    %v497 = vmul.f32 %v477, %v494
    %v498 = vmul.f32 %v478, %v494
    %v499 = vmul.f32 %v479, %v494
    %v500 = vmul.f32 %v480, %v494
    %v501 = vmul.f32 %v481, %v494
    %v502 = vmul.f32 %v482, %v494
    %v503 = vmul.f32 %v483, %v494
    %v504 = vmul.f32 %v484, %v494
    %v505 = vmul.f32 %v485, %v494
    %v506 = vmul.f32 %v486, %v494
    %v507 = vmul.f32 %v487, %v494
    %v508 = vmul.f32 %v488, %v494
    %v509 = vmul.f32 %v489, %v494
    %v510 = vmul.f32 %v490, %v494
    %v511 = vlaneseq
    %v512 = vshrl.u32 %v511, 7
    %v513 = vsub.s32 0, %v512
    %v514 = vrot.slane %v280, %v513
    %v515 = vadd.f32 %v495, %v514
    %v516 = vadd.f32 %v496, %v514
    %v517 = vadd.f32 %v497, %v514
    %v518 = vadd.f32 %v498, %v514
    %v519 = vadd.f32 %v499, %v514
    %v520 = vadd.f32 %v500, %v514
    %v521 = vadd.f32 %v501, %v514
    %v522 = vadd.f32 %v502, %v514
    %v523 = vadd.f32 %v503, %v514
    %v524 = vadd.f32 %v504, %v514
    %v525 = vadd.f32 %v505, %v514
    %v526 = vadd.f32 %v506, %v514
    %v527 = vadd.f32 %v507, %v514
    %v528 = vadd.f32 %v508, %v514
    %v529 = vadd.f32 %v509, %v514
    %v530 = vadd.f32 %v510, %v514
    %v531 = vmax.f32 %v515, 0.0
    %v532 = vmax.f32 %v516, 0.0
    %v533 = vmax.f32 %v517, 0.0
    %v534 = vmax.f32 %v518, 0.0
    %v535 = vmax.f32 %v519, 0.0
    %v536 = vmax.f32 %v520, 0.0
    %v537 = vmax.f32 %v521, 0.0
    %v538 = vmax.f32 %v522, 0.0
    %v539 = vmax.f32 %v523, 0.0
    %v540 = vmax.f32 %v524, 0.0
    %v541 = vmax.f32 %v525, 0.0
    %v542 = vmax.f32 %v526, 0.0
    %v543 = vmax.f32 %v527, 0.0
    %v544 = vmax.f32 %v528, 0.0
    %v545 = vmax.f32 %v529, 0.0
    %v546 = vmax.f32 %v530, 0.0
    %v547 = vld [vmem:[#allocation2] sm:$0xff]
    %v548 = vld [vmem:[#allocation2 + $0x8] sm:$0xff]
    %v549 = vld [vmem:[#allocation2 + $0x10] sm:$0xff]
    %v550 = vld [vmem:[#allocation2 + $0x18] sm:$0xff]
    %v551 = vld [vmem:[#allocation6 + $0x3] sm:$0x1]
    %v552 = vlaneseq
    %v553 = vshrl.u32 %v552, 7
    %v554 = vsub.s32 0, %v553
    %v555 = vrot.slane %v551, %v554
    %v557 = vsel %vm281, %v531, 0
    %v560 = vsel %vm281, %v532, 0
    %v563 = vsel %vm281, %v533, 0
    %v566 = vsel %vm281, %v534, 0
    %v569 = vsel %vm281, %v535, 0
    %v572 = vsel %vm281, %v536, 0
    %v575 = vsel %vm281, %v537, 0
    %v578 = vsel %vm281, %v538, 0
    %v581 = vsel %vm281, %v539, 0
    %v584 = vsel %vm281, %v540, 0
    %v587 = vsel %vm281, %v541, 0
    %v590 = vsel %vm281, %v542, 0
    %v593 = vsel %vm281, %v543, 0
    %v596 = vsel %vm281, %v544, 0
    %v599 = vsel %vm281, %v545, 0
    %v602 = vsel %vm281, %v546, 0
    %604 = vmatprep.subr.mxu0 0.0
    %605 = vmatpush1.msra.mxu0 0.0
    %606 = vmatprep.subr.mxu0 0.0
    %607 = vmatpush1.msra.mxu0 0.0
    %608 = vmatprep.subr.mxu0 0.0
    %609 = vmatpush1.msra.mxu0 0.0
    %610 = vmatprep.subr.mxu0 0.0
    %611 = vmatpush1.msra.mxu0 0.0
    %612 = vmatprep.subr.mxu0 0.0
    %613 = vmatpush1.msra.mxu0 0.0
    %614 = vmatprep.subr.mxu0 0.0
    %615 = vmatpush1.msra.mxu0 0.0
    %616 = vmatprep.subr.mxu0 0.0
    %617 = vmatpush1.msra.mxu0 0.0
    %618 = vmatprep.subr.mxu0 0.0
    %619 = vmatpush1.msra.mxu0 0.0
    %620 = vmatprep.subr.mxu0 0.0
    %621 = vmatpush1.msra.mxu0 0.0
    %622 = vmatprep.subr.mxu0 0.0
    %623 = vmatpush1.msra.mxu0 0.0
    %624 = vmatprep.subr.mxu0 0.0
    %625 = vmatpush1.msra.mxu0 0.0
    %626 = vmatprep.subr.mxu0 0.0
    %627 = vmatpush1.msra.mxu0 0.0
    %628 = vmatprep.subr.mxu0 0.0
    %629 = vmatpush1.msra.mxu0 %v550
    %630 = vmatprep.subr.mxu0 0.0
    %631 = vmatpush1.msra.mxu0 %v549
    %632 = vmatprep.subr.mxu0 0.0
    %633 = vmatpush1.msra.mxu0 %v548
    %634 = vmatprep.subr.mxu0 0.0
    %635 = vmatpush1.msra.mxu0 %v547
    %636 = vmatprep.subr.mxu0 0.0
    %637 = vmatpush2.msra.mxu0 0.0
    %638 = vmatprep.subr.mxu0 0.0
    %639 = vmatpush2.msra.mxu0 0.0
    %640 = vmatprep.subr.mxu0 0.0
    %641 = vmatpush2.msra.mxu0 0.0
    %642 = vmatprep.subr.mxu0 0.0
    %643 = vmatpush2.msra.mxu0 0.0
    %644 = vmatprep.subr.mxu0 0.0
    %645 = vmatpush2.msra.mxu0 0.0
    %646 = vmatprep.subr.mxu0 0.0
    %647 = vmatpush2.msra.mxu0 0.0
    %648 = vmatprep.subr.mxu0 0.0
    %649 = vmatpush2.msra.mxu0 0.0
    %650 = vmatprep.subr.mxu0 0.0
    %651 = vmatpush2.msra.mxu0 0.0
    %652 = vmatprep.subr.mxu0 0.0
    %653 = vmatpush2.msra.mxu0 0.0
    %654 = vmatprep.subr.mxu0 0.0
    %655 = vmatpush2.msra.mxu0 0.0
    %656 = vmatprep.subr.mxu0 0.0
    %657 = vmatpush2.msra.mxu0 0.0
    %658 = vmatprep.subr.mxu0 0.0
    %659 = vmatpush2.msra.mxu0 0.0
    %660 = vmatprep.subr.mxu0 0.0
    %661 = vmatpush2.msra.mxu0 0.0
    %662 = vmatprep.subr.mxu0 0.0
    %663 = vmatpush2.msra.mxu0 0.0
    %664 = vmatprep.subr.mxu0 0.0
    %665 = vmatpush2.msra.mxu0 0.0
    %666 = vmatprep.subr.mxu0 0.0
    %667 = vmatpush2.msra.mxu0 0.0
    %668 = vmatprep.mubr.f32.mxu0 0.0
    %669 = vmatmul.mubr.f32.gmra.mxu0 %v557
    %v670 = vpop.f32.mrf.mxu0
    %v671 = vadd.f32 %v555, %v670
    %v672 = vpop.f32.mrf.mxu0
    %673 = vmatprep.mubr.f32.mxu0 0.0
    %674 = vmatmul.mubr.f32.gmra.mxu0 %v560
    %v675 = vpop.f32.mrf.mxu0
    %v676 = vadd.f32 %v555, %v675
    %v677 = vpop.f32.mrf.mxu0
    %678 = vmatprep.mubr.f32.mxu0 0.0
    %679 = vmatmul.mubr.f32.gmra.mxu0 %v563
    %v680 = vpop.f32.mrf.mxu0
    %v681 = vadd.f32 %v555, %v680
    %v682 = vpop.f32.mrf.mxu0
    %683 = vmatprep.mubr.f32.mxu0 0.0
    %684 = vmatmul.mubr.f32.gmra.mxu0 %v566
    %v685 = vpop.f32.mrf.mxu0
    %v686 = vadd.f32 %v555, %v685
    %v687 = vpop.f32.mrf.mxu0
    %688 = vmatprep.mubr.f32.mxu0 0.0
    %689 = vmatmul.mubr.f32.gmra.mxu0 %v569
    %v690 = vpop.f32.mrf.mxu0
    %v691 = vadd.f32 %v555, %v690
    %v692 = vpop.f32.mrf.mxu0
    %693 = vmatprep.mubr.f32.mxu0 0.0
    %694 = vmatmul.mubr.f32.gmra.mxu0 %v572
    %v695 = vpop.f32.mrf.mxu0
    %v696 = vadd.f32 %v555, %v695
    %v697 = vpop.f32.mrf.mxu0
    %698 = vmatprep.mubr.f32.mxu0 0.0
    %699 = vmatmul.mubr.f32.gmra.mxu0 %v575
    %v700 = vpop.f32.mrf.mxu0
    %v701 = vadd.f32 %v555, %v700
    %v702 = vpop.f32.mrf.mxu0
    %703 = vmatprep.mubr.f32.mxu0 0.0
    %704 = vmatmul.mubr.f32.gmra.mxu0 %v578
    %v705 = vpop.f32.mrf.mxu0
    %v706 = vadd.f32 %v555, %v705
    %v707 = vpop.f32.mrf.mxu0
    %708 = vmatprep.mubr.f32.mxu0 0.0
    %709 = vmatmul.mubr.f32.gmra.mxu0 %v581
    %v710 = vpop.f32.mrf.mxu0
    %v711 = vadd.f32 %v555, %v710
    %v712 = vpop.f32.mrf.mxu0
    %713 = vmatprep.mubr.f32.mxu0 0.0
    %714 = vmatmul.mubr.f32.gmra.mxu0 %v584
    %v715 = vpop.f32.mrf.mxu0
    %v716 = vadd.f32 %v555, %v715
    %v717 = vpop.f32.mrf.mxu0
    %718 = vmatprep.mubr.f32.mxu0 0.0
    %719 = vmatmul.mubr.f32.gmra.mxu0 %v587
    %v720 = vpop.f32.mrf.mxu0
    %v721 = vadd.f32 %v555, %v720
    %v722 = vpop.f32.mrf.mxu0
    %723 = vmatprep.mubr.f32.mxu0 0.0
    %724 = vmatmul.mubr.f32.gmra.mxu0 %v590
    %v725 = vpop.f32.mrf.mxu0
    %v726 = vadd.f32 %v555, %v725
    %v727 = vpop.f32.mrf.mxu0
    %728 = vmatprep.mubr.f32.mxu0 0.0
    %729 = vmatmul.mubr.f32.gmra.mxu0 %v593
    %v730 = vpop.f32.mrf.mxu0
    %v731 = vadd.f32 %v555, %v730
    %v732 = vpop.f32.mrf.mxu0
    %733 = vmatprep.mubr.f32.mxu0 0.0
    %734 = vmatmul.mubr.f32.gmra.mxu0 %v596
    %v735 = vpop.f32.mrf.mxu0
    %v736 = vadd.f32 %v555, %v735
    %v737 = vpop.f32.mrf.mxu0
    %738 = vmatprep.mubr.f32.mxu0 0.0
    %739 = vmatmul.mubr.f32.gmra.mxu0 %v599
    %v740 = vpop.f32.mrf.mxu0
    %v741 = vadd.f32 %v555, %v740
    %v742 = vpop.f32.mrf.mxu0
    %743 = vmatprep.mubr.f32.mxu0 0.0
    %744 = vmatmul.mubr.f32.gmra.mxu0 %v602
    %v745 = vpop.f32.mrf.mxu0
    %v746 = vadd.f32 %v555, %v745
    %v747 = vpop.f32.mrf.mxu0
    %748 = vdwg.mxu0
    %v749 = vld [vmem:[#allocation6 + $0x4] sm:$0x1]
    %v750 = vld [vmem:[#allocation6 + $0x5] sm:$0x1]
    %v751 = vsel %vm281, %v671, 0.0
    %752 = vadd.xlane.f32.xlu0 %v751
    %v753 = vpop.xlane.xlu0 %752
    %v754 = vsel %vm281, %v676, 0.0
    %755 = vadd.xlane.f32.xlu0 %v754
    %v756 = vpop.xlane.xlu0 %755
    %v757 = vsel %vm281, %v681, 0.0
    %758 = vadd.xlane.f32.xlu0 %v757
    %v759 = vpop.xlane.xlu0 %758
    %v760 = vsel %vm281, %v686, 0.0
    %761 = vadd.xlane.f32.xlu0 %v760
    %v762 = vpop.xlane.xlu0 %761
    %v763 = vsel %vm281, %v691, 0.0
    %764 = vadd.xlane.f32.xlu0 %v763
    %v765 = vpop.xlane.xlu0 %764
    %v766 = vsel %vm281, %v696, 0.0
    %767 = vadd.xlane.f32.xlu0 %v766
    %v768 = vpop.xlane.xlu0 %767
    %v769 = vsel %vm281, %v701, 0.0
    %770 = vadd.xlane.f32.xlu0 %v769
    %v771 = vpop.xlane.xlu0 %770
    %v772 = vsel %vm281, %v706, 0.0
    %773 = vadd.xlane.f32.xlu0 %v772
    %v774 = vpop.xlane.xlu0 %773
    %v775 = vsel %vm281, %v711, 0.0
    %776 = vadd.xlane.f32.xlu0 %v775
    %v777 = vpop.xlane.xlu0 %776
    %v778 = vsel %vm281, %v716, 0.0
    %779 = vadd.xlane.f32.xlu0 %v778
    %v780 = vpop.xlane.xlu0 %779
    %v781 = vsel %vm281, %v721, 0.0
    %782 = vadd.xlane.f32.xlu0 %v781
    %v783 = vpop.xlane.xlu0 %782
    %v784 = vsel %vm281, %v726, 0.0
    %785 = vadd.xlane.f32.xlu0 %v784
    %v786 = vpop.xlane.xlu0 %785
    %v787 = vsel %vm281, %v731, 0.0
    %788 = vadd.xlane.f32.xlu0 %v787
    %v789 = vpop.xlane.xlu0 %788
    %v790 = vsel %vm281, %v736, 0.0
    %791 = vadd.xlane.f32.xlu0 %v790
    %v792 = vpop.xlane.xlu0 %791
    %v793 = vsel %vm281, %v741, 0.0
    %794 = vadd.xlane.f32.xlu0 %v793
    %v795 = vpop.xlane.xlu0 %794
    %v796 = vsel %vm281, %v746, 0.0
    %797 = vadd.xlane.f32.xlu0 %v796
    %v798 = vpop.xlane.xlu0 %797
    %v799 = vmul.f32 %v753, %v330
    %v800 = vmul.f32 %v756, %v330
    %v801 = vmul.f32 %v759, %v330
    %v802 = vmul.f32 %v762, %v330
    %v803 = vmul.f32 %v765, %v330
    %v804 = vmul.f32 %v768, %v330
    %v805 = vmul.f32 %v771, %v330
    %v806 = vmul.f32 %v774, %v330
    %v807 = vmul.f32 %v777, %v330
    %v808 = vmul.f32 %v780, %v330
    %v809 = vmul.f32 %v783, %v330
    %v810 = vmul.f32 %v786, %v330
    %v811 = vmul.f32 %v789, %v330
    %v812 = vmul.f32 %v792, %v330
    %v813 = vmul.f32 %v795, %v330
    %v814 = vmul.f32 %v798, %v330
    %v815 = vsub.f32 %v671, %v799
    %v816 = vsub.f32 %v676, %v800
    %v817 = vsub.f32 %v681, %v801
    %v818 = vsub.f32 %v686, %v802
    %v819 = vsub.f32 %v691, %v803
    %v820 = vsub.f32 %v696, %v804
    %v821 = vsub.f32 %v701, %v805
    %v822 = vsub.f32 %v706, %v806
    %v823 = vsub.f32 %v711, %v807
    %v824 = vsub.f32 %v716, %v808
    %v825 = vsub.f32 %v721, %v809
    %v826 = vsub.f32 %v726, %v810
    %v827 = vsub.f32 %v731, %v811
    %v828 = vsub.f32 %v736, %v812
    %v829 = vsub.f32 %v741, %v813
    %v830 = vsub.f32 %v746, %v814
    %v831 = vmul.f32 %v815, %v815
    %v832 = vmul.f32 %v816, %v816
    %v833 = vmul.f32 %v817, %v817
    %v834 = vmul.f32 %v818, %v818
    %v835 = vmul.f32 %v819, %v819
    %v836 = vmul.f32 %v820, %v820
    %v837 = vmul.f32 %v821, %v821
    %v838 = vmul.f32 %v822, %v822
    %v839 = vmul.f32 %v823, %v823
    %v840 = vmul.f32 %v824, %v824
    %v841 = vmul.f32 %v825, %v825
    %v842 = vmul.f32 %v826, %v826
    %v843 = vmul.f32 %v827, %v827
    %v844 = vmul.f32 %v828, %v828
    %v845 = vmul.f32 %v829, %v829
    %v846 = vmul.f32 %v830, %v830
    %v847 = vsel %vm281, %v831, 0.0
    %848 = vadd.xlane.f32.xlu0 %v847
    %v849 = vpop.xlane.xlu0 %848
    %v850 = vsel %vm281, %v832, 0.0
    %851 = vadd.xlane.f32.xlu0 %v850
    %v852 = vpop.xlane.xlu0 %851
    %v853 = vsel %vm281, %v833, 0.0
    %854 = vadd.xlane.f32.xlu0 %v853
    %v855 = vpop.xlane.xlu0 %854
    %v856 = vsel %vm281, %v834, 0.0
    %857 = vadd.xlane.f32.xlu0 %v856
    %v858 = vpop.xlane.xlu0 %857
    %v859 = vsel %vm281, %v835, 0.0
    %860 = vadd.xlane.f32.xlu0 %v859
    %v861 = vpop.xlane.xlu0 %860
    %v862 = vsel %vm281, %v836, 0.0
    %863 = vadd.xlane.f32.xlu0 %v862
    %v864 = vpop.xlane.xlu0 %863
    %v865 = vsel %vm281, %v837, 0.0
    %866 = vadd.xlane.f32.xlu0 %v865
    %v867 = vpop.xlane.xlu0 %866
    %v868 = vsel %vm281, %v838, 0.0
    %869 = vadd.xlane.f32.xlu0 %v868
    %v870 = vpop.xlane.xlu0 %869
    %v871 = vsel %vm281, %v839, 0.0
    %872 = vadd.xlane.f32.xlu0 %v871
    %v873 = vpop.xlane.xlu0 %872
    %v874 = vsel %vm281, %v840, 0.0
    %875 = vadd.xlane.f32.xlu0 %v874
    %v876 = vpop.xlane.xlu0 %875
    %v877 = vsel %vm281, %v841, 0.0
    %878 = vadd.xlane.f32.xlu0 %v877
    %v879 = vpop.xlane.xlu0 %878
    %v880 = vsel %vm281, %v842, 0.0
    %881 = vadd.xlane.f32.xlu0 %v880
    %v882 = vpop.xlane.xlu0 %881
    %v883 = vsel %vm281, %v843, 0.0
    %884 = vadd.xlane.f32.xlu0 %v883
    %v885 = vpop.xlane.xlu0 %884
    %v886 = vsel %vm281, %v844, 0.0
    %887 = vadd.xlane.f32.xlu0 %v886
    %v888 = vpop.xlane.xlu0 %887
    %v889 = vsel %vm281, %v845, 0.0
    %890 = vadd.xlane.f32.xlu0 %v889
    %v891 = vpop.xlane.xlu0 %890
    %v892 = vsel %vm281, %v846, 0.0
    %893 = vadd.xlane.f32.xlu0 %v892
    %v894 = vpop.xlane.xlu0 %893
    %v895 = vmul.f32 %v849, %v330
    %v896 = vmul.f32 %v852, %v330
    %v897 = vmul.f32 %v855, %v330
    %v898 = vmul.f32 %v858, %v330
    %v899 = vmul.f32 %v861, %v330
    %v900 = vmul.f32 %v864, %v330
    %v901 = vmul.f32 %v867, %v330
    %v902 = vmul.f32 %v870, %v330
    %v903 = vmul.f32 %v873, %v330
    %v904 = vmul.f32 %v876, %v330
    %v905 = vmul.f32 %v879, %v330
    %v906 = vmul.f32 %v882, %v330
    %v907 = vmul.f32 %v885, %v330
    %v908 = vmul.f32 %v888, %v330
    %v909 = vmul.f32 %v891, %v330
    %v910 = vmul.f32 %v894, %v330
    %v911 = vadd.f32 %v895, 1e-05
    %v912 = vadd.f32 %v896, 1e-05
    %v913 = vadd.f32 %v897, 1e-05
    %v914 = vadd.f32 %v898, 1e-05
    %v915 = vadd.f32 %v899, 1e-05
    %v916 = vadd.f32 %v900, 1e-05
    %v917 = vadd.f32 %v901, 1e-05
    %v918 = vadd.f32 %v902, 1e-05
    %v919 = vadd.f32 %v903, 1e-05
    %v920 = vadd.f32 %v904, 1e-05
    %v921 = vadd.f32 %v905, 1e-05
    %v922 = vadd.f32 %v906, 1e-05
    %v923 = vadd.f32 %v907, 1e-05
    %v924 = vadd.f32 %v908, 1e-05
    %v925 = vadd.f32 %v909, 1e-05
    %v926 = vadd.f32 %v910, 1e-05
    %v927 = vrsqrt.pop %v911
    %v928 = vrsqrt.pop %v912
    %v929 = vrsqrt.pop %v913
    %v930 = vrsqrt.pop %v914
    %v931 = vrsqrt.pop %v915
    %v932 = vrsqrt.pop %v916
    %v933 = vrsqrt.pop %v917
    %v934 = vrsqrt.pop %v918
    %v935 = vrsqrt.pop %v919
    %v936 = vrsqrt.pop %v920
    %v937 = vrsqrt.pop %v921
    %v938 = vrsqrt.pop %v922
    %v939 = vrsqrt.pop %v923
    %v940 = vrsqrt.pop %v924
    %v941 = vrsqrt.pop %v925
    %v942 = vrsqrt.pop %v926
    %v943 = vmul.f32 %v815, %v927
    %v944 = vmul.f32 %v816, %v928
    %v945 = vmul.f32 %v817, %v929
    %v946 = vmul.f32 %v818, %v930
    %v947 = vmul.f32 %v819, %v931
    %v948 = vmul.f32 %v820, %v932
    %v949 = vmul.f32 %v821, %v933
    %v950 = vmul.f32 %v822, %v934
    %v951 = vmul.f32 %v823, %v935
    %v952 = vmul.f32 %v824, %v936
    %v953 = vmul.f32 %v825, %v937
    %v954 = vmul.f32 %v826, %v938
    %v955 = vmul.f32 %v827, %v939
    %v956 = vmul.f32 %v828, %v940
    %v957 = vmul.f32 %v829, %v941
    %v958 = vmul.f32 %v830, %v942
    %v959 = vlaneseq
    %v960 = vshrl.u32 %v959, 7
    %v961 = vsub.s32 0, %v960
    %v962 = vrot.slane %v749, %v961
    %v963 = vmul.f32 %v943, %v962
    %v964 = vmul.f32 %v944, %v962
    %v965 = vmul.f32 %v945, %v962
    %v966 = vmul.f32 %v946, %v962
    %v967 = vmul.f32 %v947, %v962
    %v968 = vmul.f32 %v948, %v962
    %v969 = vmul.f32 %v949, %v962
    %v970 = vmul.f32 %v950, %v962
    %v971 = vmul.f32 %v951, %v962
    %v972 = vmul.f32 %v952, %v962
    %v973 = vmul.f32 %v953, %v962
    %v974 = vmul.f32 %v954, %v962
    %v975 = vmul.f32 %v955, %v962
    %v976 = vmul.f32 %v956, %v962
    %v977 = vmul.f32 %v957, %v962
    %v978 = vmul.f32 %v958, %v962
    %v979 = vlaneseq
    %v980 = vshrl.u32 %v979, 7
    %v981 = vsub.s32 0, %v980
    %v982 = vrot.slane %v750, %v981
    %v983 = vadd.f32 %v963, %v982
    %v984 = vadd.f32 %v964, %v982
    %v985 = vadd.f32 %v965, %v982
    %v986 = vadd.f32 %v966, %v982
    %v987 = vadd.f32 %v967, %v982
    %v988 = vadd.f32 %v968, %v982
    %v989 = vadd.f32 %v969, %v982
    %v990 = vadd.f32 %v970, %v982
    %v991 = vadd.f32 %v971, %v982
    %v992 = vadd.f32 %v972, %v982
    %v993 = vadd.f32 %v973, %v982
    %v994 = vadd.f32 %v974, %v982
    %v995 = vadd.f32 %v975, %v982
    %v996 = vadd.f32 %v976, %v982
    %v997 = vadd.f32 %v977, %v982
    %v998 = vadd.f32 %v978, %v982
    %v999 = vmax.f32 %v983, 0.0
    %v1000 = vmax.f32 %v984, 0.0
    %v1001 = vmax.f32 %v985, 0.0
    %v1002 = vmax.f32 %v986, 0.0
    %v1003 = vmax.f32 %v987, 0.0
    %v1004 = vmax.f32 %v988, 0.0
    %v1005 = vmax.f32 %v989, 0.0
    %v1006 = vmax.f32 %v990, 0.0
    %v1007 = vmax.f32 %v991, 0.0
    %v1008 = vmax.f32 %v992, 0.0
    %v1009 = vmax.f32 %v993, 0.0
    %v1010 = vmax.f32 %v994, 0.0
    %v1011 = vmax.f32 %v995, 0.0
    %v1012 = vmax.f32 %v996, 0.0
    %v1013 = vmax.f32 %v997, 0.0
    %v1014 = vmax.f32 %v998, 0.0
    %v1015 = vld [vmem:[#allocation4] sm:$0xff]
    %v1016 = vld [vmem:[#allocation4 + $0x8] sm:$0xff]
    %v1017 = vld [vmem:[#allocation4 + $0x10] sm:$0xff]
    %v1018 = vld [vmem:[#allocation4 + $0x18] sm:$0xff]
    %v1020 = vsel %vm281, %v999, 0
    %v1023 = vsel %vm281, %v1000, 0
    %v1026 = vsel %vm281, %v1001, 0
    %v1029 = vsel %vm281, %v1002, 0
    %v1032 = vsel %vm281, %v1003, 0
    %v1035 = vsel %vm281, %v1004, 0
    %v1038 = vsel %vm281, %v1005, 0
    %v1041 = vsel %vm281, %v1006, 0
    %v1044 = vsel %vm281, %v1007, 0
    %v1047 = vsel %vm281, %v1008, 0
    %v1050 = vsel %vm281, %v1009, 0
    %v1053 = vsel %vm281, %v1010, 0
    %v1056 = vsel %vm281, %v1011, 0
    %v1059 = vsel %vm281, %v1012, 0
    %v1062 = vsel %vm281, %v1013, 0
    %v1065 = vsel %vm281, %v1014, 0
    %1067 = vmatprep.subr.mxu0 0.0
    %1068 = vmatpush1.msra.mxu0 0.0
    %1069 = vmatprep.subr.mxu0 0.0
    %1070 = vmatpush1.msra.mxu0 0.0
    %1071 = vmatprep.subr.mxu0 0.0
    %1072 = vmatpush1.msra.mxu0 0.0
    %1073 = vmatprep.subr.mxu0 0.0
    %1074 = vmatpush1.msra.mxu0 0.0
    %1075 = vmatprep.subr.mxu0 0.0
    %1076 = vmatpush1.msra.mxu0 0.0
    %1077 = vmatprep.subr.mxu0 0.0
    %1078 = vmatpush1.msra.mxu0 0.0
    %1079 = vmatprep.subr.mxu0 0.0
    %1080 = vmatpush1.msra.mxu0 0.0
    %1081 = vmatprep.subr.mxu0 0.0
    %1082 = vmatpush1.msra.mxu0 0.0
    %1083 = vmatprep.subr.mxu0 0.0
    %1084 = vmatpush1.msra.mxu0 0.0
    %1085 = vmatprep.subr.mxu0 0.0
    %1086 = vmatpush1.msra.mxu0 0.0
    %1087 = vmatprep.subr.mxu0 0.0
    %1088 = vmatpush1.msra.mxu0 0.0
    %1089 = vmatprep.subr.mxu0 0.0
    %1090 = vmatpush1.msra.mxu0 0.0
    %1091 = vmatprep.subr.mxu0 0.0
    %1092 = vmatpush1.msra.mxu0 %v1018
    %1093 = vmatprep.subr.mxu0 0.0
    %1094 = vmatpush1.msra.mxu0 %v1017
    %1095 = vmatprep.subr.mxu0 0.0
    %1096 = vmatpush1.msra.mxu0 %v1016
    %1097 = vmatprep.subr.mxu0 0.0
    %1098 = vmatpush1.msra.mxu0 %v1015
    %1099 = vmatprep.subr.mxu0 0.0
    %1100 = vmatpush2.msra.mxu0 0.0
    %1101 = vmatprep.subr.mxu0 0.0
    %1102 = vmatpush2.msra.mxu0 0.0
    %1103 = vmatprep.subr.mxu0 0.0
    %1104 = vmatpush2.msra.mxu0 0.0
    %1105 = vmatprep.subr.mxu0 0.0
    %1106 = vmatpush2.msra.mxu0 0.0
    %1107 = vmatprep.subr.mxu0 0.0
    %1108 = vmatpush2.msra.mxu0 0.0
    %1109 = vmatprep.subr.mxu0 0.0
    %1110 = vmatpush2.msra.mxu0 0.0
    %1111 = vmatprep.subr.mxu0 0.0
    %1112 = vmatpush2.msra.mxu0 0.0
    %1113 = vmatprep.subr.mxu0 0.0
    %1114 = vmatpush2.msra.mxu0 0.0
    %1115 = vmatprep.subr.mxu0 0.0
    %1116 = vmatpush2.msra.mxu0 0.0
    %1117 = vmatprep.subr.mxu0 0.0
    %1118 = vmatpush2.msra.mxu0 0.0
    %1119 = vmatprep.subr.mxu0 0.0
    %1120 = vmatpush2.msra.mxu0 0.0
    %1121 = vmatprep.subr.mxu0 0.0
    %1122 = vmatpush2.msra.mxu0 0.0
    %1123 = vmatprep.subr.mxu0 0.0
    %1124 = vmatpush2.msra.mxu0 0.0
    %1125 = vmatprep.subr.mxu0 0.0
    %1126 = vmatpush2.msra.mxu0 0.0
    %1127 = vmatprep.subr.mxu0 0.0
    %1128 = vmatpush2.msra.mxu0 0.0
    %1129 = vmatprep.subr.mxu0 0.0
    %1130 = vmatpush2.msra.mxu0 0.0
    %1131 = vmatprep.mubr.f32.mxu0 0.0
    %1132 = vmatmul.mubr.f32.gmra.mxu0 %v1020
    %v1133 = vpop.f32.mrf.mxu0
    %v1134 = vadd.f32 0.0, %v1133
    %v1135 = vpop.f32.mrf.mxu0
    %1136 = vmatprep.mubr.f32.mxu0 0.0
    %1137 = vmatmul.mubr.f32.gmra.mxu0 %v1023
    %v1138 = vpop.f32.mrf.mxu0
    %v1139 = vadd.f32 0.0, %v1138
    %v1140 = vpop.f32.mrf.mxu0
    %1141 = vmatprep.mubr.f32.mxu0 0.0
    %1142 = vmatmul.mubr.f32.gmra.mxu0 %v1026
    %v1143 = vpop.f32.mrf.mxu0
    %v1144 = vadd.f32 0.0, %v1143
    %v1145 = vpop.f32.mrf.mxu0
    %1146 = vmatprep.mubr.f32.mxu0 0.0
    %1147 = vmatmul.mubr.f32.gmra.mxu0 %v1029
    %v1148 = vpop.f32.mrf.mxu0
    %v1149 = vadd.f32 0.0, %v1148
    %v1150 = vpop.f32.mrf.mxu0
    %1151 = vmatprep.mubr.f32.mxu0 0.0
    %1152 = vmatmul.mubr.f32.gmra.mxu0 %v1032
    %v1153 = vpop.f32.mrf.mxu0
    %v1154 = vadd.f32 0.0, %v1153
    %v1155 = vpop.f32.mrf.mxu0
    %1156 = vmatprep.mubr.f32.mxu0 0.0
    %1157 = vmatmul.mubr.f32.gmra.mxu0 %v1035
    %v1158 = vpop.f32.mrf.mxu0
    %v1159 = vadd.f32 0.0, %v1158
    %v1160 = vpop.f32.mrf.mxu0
    %1161 = vmatprep.mubr.f32.mxu0 0.0
    %1162 = vmatmul.mubr.f32.gmra.mxu0 %v1038
    %v1163 = vpop.f32.mrf.mxu0
    %v1164 = vadd.f32 0.0, %v1163
    %v1165 = vpop.f32.mrf.mxu0
    %1166 = vmatprep.mubr.f32.mxu0 0.0
    %1167 = vmatmul.mubr.f32.gmra.mxu0 %v1041
    %v1168 = vpop.f32.mrf.mxu0
    %v1169 = vadd.f32 0.0, %v1168
    %v1170 = vpop.f32.mrf.mxu0
    %1171 = vmatprep.mubr.f32.mxu0 0.0
    %1172 = vmatmul.mubr.f32.gmra.mxu0 %v1044
    %v1173 = vpop.f32.mrf.mxu0
    %v1174 = vadd.f32 0.0, %v1173
    %v1175 = vpop.f32.mrf.mxu0
    %1176 = vmatprep.mubr.f32.mxu0 0.0
    %1177 = vmatmul.mubr.f32.gmra.mxu0 %v1047
    %v1178 = vpop.f32.mrf.mxu0
    %v1179 = vadd.f32 0.0, %v1178
    %v1180 = vpop.f32.mrf.mxu0
    %1181 = vmatprep.mubr.f32.mxu0 0.0
    %1182 = vmatmul.mubr.f32.gmra.mxu0 %v1050
    %v1183 = vpop.f32.mrf.mxu0
    %v1184 = vadd.f32 0.0, %v1183
    %v1185 = vpop.f32.mrf.mxu0
    %1186 = vmatprep.mubr.f32.mxu0 0.0
    %1187 = vmatmul.mubr.f32.gmra.mxu0 %v1053
    %v1188 = vpop.f32.mrf.mxu0
    %v1189 = vadd.f32 0.0, %v1188
    %v1190 = vpop.f32.mrf.mxu0
    %1191 = vmatprep.mubr.f32.mxu0 0.0
    %1192 = vmatmul.mubr.f32.gmra.mxu0 %v1056
    %v1193 = vpop.f32.mrf.mxu0
    %v1194 = vadd.f32 0.0, %v1193
    %v1195 = vpop.f32.mrf.mxu0
    %1196 = vmatprep.mubr.f32.mxu0 0.0
    %1197 = vmatmul.mubr.f32.gmra.mxu0 %v1059
    %v1198 = vpop.f32.mrf.mxu0
    %v1199 = vadd.f32 0.0, %v1198
    %v1200 = vpop.f32.mrf.mxu0
    %1201 = vmatprep.mubr.f32.mxu0 0.0
    %1202 = vmatmul.mubr.f32.gmra.mxu0 %v1062
    %v1203 = vpop.f32.mrf.mxu0
    %v1204 = vadd.f32 0.0, %v1203
    %v1205 = vpop.f32.mrf.mxu0
    %1206 = vmatprep.mubr.f32.mxu0 0.0
    %1207 = vmatmul.mubr.f32.gmra.mxu0 %v1065
    %v1208 = vpop.f32.mrf.mxu0
    %v1209 = vadd.f32 0.0, %v1208
    %v1210 = vpop.f32.mrf.mxu0
    %1211 = vdwg.mxu0
    %v1212 = vld [vmem:[#allocation6 + $0x6] sm:$0x1]
    %v1213 = vlaneseq
    %v1214 = vshrl.u32 %v1213, 7
    %v1215 = vsub.s32 0, %v1214
    %v1216 = vrot.slane %v1212, %v1215
    %v1217 = vadd.f32 %v1134, %v1216
    %v1218 = vadd.f32 %v1139, %v1216
    %v1219 = vadd.f32 %v1144, %v1216
    %v1220 = vadd.f32 %v1149, %v1216
    %v1221 = vadd.f32 %v1154, %v1216
    %v1222 = vadd.f32 %v1159, %v1216
    %v1223 = vadd.f32 %v1164, %v1216
    %v1224 = vadd.f32 %v1169, %v1216
    %v1225 = vadd.f32 %v1174, %v1216
    %v1226 = vadd.f32 %v1179, %v1216
    %v1227 = vadd.f32 %v1184, %v1216
    %v1228 = vadd.f32 %v1189, %v1216
    %v1229 = vadd.f32 %v1194, %v1216
    %v1230 = vadd.f32 %v1199, %v1216
    %v1231 = vadd.f32 %v1204, %v1216
    %v1232 = vadd.f32 %v1209, %v1216
    %1233 = vmax.xlane.f32.xlu0 %v1217
    %v1234 = vpop.xlane.xlu0 %1233
    %1235 = vmax.xlane.f32.xlu0 %v1218
    %v1236 = vpop.xlane.xlu0 %1235
    %1237 = vmax.xlane.f32.xlu0 %v1219
    %v1238 = vpop.xlane.xlu0 %1237
    %1239 = vmax.xlane.f32.xlu0 %v1220
    %v1240 = vpop.xlane.xlu0 %1239
    %1241 = vmax.xlane.f32.xlu0 %v1221
    %v1242 = vpop.xlane.xlu0 %1241
    %1243 = vmax.xlane.f32.xlu0 %v1222
    %v1244 = vpop.xlane.xlu0 %1243
    %1245 = vmax.xlane.f32.xlu0 %v1223
    %v1246 = vpop.xlane.xlu0 %1245
    %1247 = vmax.xlane.f32.xlu0 %v1224
    %v1248 = vpop.xlane.xlu0 %1247
    %1249 = vmax.xlane.f32.xlu0 %v1225
    %v1250 = vpop.xlane.xlu0 %1249
    %1251 = vmax.xlane.f32.xlu0 %v1226
    %v1252 = vpop.xlane.xlu0 %1251
    %1253 = vmax.xlane.f32.xlu0 %v1227
    %v1254 = vpop.xlane.xlu0 %1253
    %1255 = vmax.xlane.f32.xlu0 %v1228
    %v1256 = vpop.xlane.xlu0 %1255
    %1257 = vmax.xlane.f32.xlu0 %v1229
    %v1258 = vpop.xlane.xlu0 %1257
    %1259 = vmax.xlane.f32.xlu0 %v1230
    %v1260 = vpop.xlane.xlu0 %1259
    %1261 = vmax.xlane.f32.xlu0 %v1231
    %v1262 = vpop.xlane.xlu0 %1261
    %1263 = vmax.xlane.f32.xlu0 %v1232
    %v1264 = vpop.xlane.xlu0 %1263
    %v1265 = vsub.f32 %v1217, %v1234
    %v1266 = vsub.f32 %v1218, %v1236
    %v1267 = vsub.f32 %v1219, %v1238
    %v1268 = vsub.f32 %v1220, %v1240
    %v1269 = vsub.f32 %v1221, %v1242
    %v1270 = vsub.f32 %v1222, %v1244
    %v1271 = vsub.f32 %v1223, %v1246
    %v1272 = vsub.f32 %v1224, %v1248
    %v1273 = vsub.f32 %v1225, %v1250
    %v1274 = vsub.f32 %v1226, %v1252
    %v1275 = vsub.f32 %v1227, %v1254
    %v1276 = vsub.f32 %v1228, %v1256
    %v1277 = vsub.f32 %v1229, %v1258
    %v1278 = vsub.f32 %v1230, %v1260
    %v1279 = vsub.f32 %v1231, %v1262
    %v1280 = vsub.f32 %v1232, %v1264
    %v1281 = vmul.f32 %v1265, 1.442695
    %v1282 = vpow.pop %v1281
    %v1283 = vmul.f32 %v1266, 1.442695
    %v1284 = vpow.pop %v1283
    %v1285 = vmul.f32 %v1267, 1.442695
    %v1286 = vpow.pop %v1285
    %v1287 = vmul.f32 %v1268, 1.442695
    %v1288 = vpow.pop %v1287
    %v1289 = vmul.f32 %v1269, 1.442695
    %v1290 = vpow.pop %v1289
    %v1291 = vmul.f32 %v1270, 1.442695
    %v1292 = vpow.pop %v1291
    %v1293 = vmul.f32 %v1271, 1.442695
    %v1294 = vpow.pop %v1293
    %v1295 = vmul.f32 %v1272, 1.442695
    %v1296 = vpow.pop %v1295
    %v1297 = vmul.f32 %v1273, 1.442695
    %v1298 = vpow.pop %v1297
    %v1299 = vmul.f32 %v1274, 1.442695
    %v1300 = vpow.pop %v1299
    %v1301 = vmul.f32 %v1275, 1.442695
    %v1302 = vpow.pop %v1301
    %v1303 = vmul.f32 %v1276, 1.442695
    %v1304 = vpow.pop %v1303
    %v1305 = vmul.f32 %v1277, 1.442695
    %v1306 = vpow.pop %v1305
    %v1307 = vmul.f32 %v1278, 1.442695
    %v1308 = vpow.pop %v1307
    %v1309 = vmul.f32 %v1279, 1.442695
    %v1310 = vpow.pop %v1309
    %v1311 = vmul.f32 %v1280, 1.442695
    %v1312 = vpow.pop %v1311
    %v1313 = vld [vmem:[%s5] sm:$0xff]
    %v1314 = vld [vmem:[%s5 + $0x8] sm:$0xff]
    %v1315 = vld [vmem:[%s5 + $0x10] sm:$0xff]
    %v1316 = vld [vmem:[%s5 + $0x18] sm:$0xff]
    %v1317 = vld [vmem:[%s5 + $0x20] sm:$0xff]
    %v1318 = vld [vmem:[%s5 + $0x28] sm:$0xff]
    %v1319 = vld [vmem:[%s5 + $0x30] sm:$0xff]
    %v1320 = vld [vmem:[%s5 + $0x38] sm:$0xff]
    %v1321 = vld [vmem:[%s5 + $0x40] sm:$0xff]
    %v1322 = vld [vmem:[%s5 + $0x48] sm:$0xff]
    %v1323 = vld [vmem:[%s5 + $0x50] sm:$0xff]
    %v1324 = vld [vmem:[%s5 + $0x58] sm:$0xff]
    %v1325 = vld [vmem:[%s5 + $0x60] sm:$0xff]
    %v1326 = vld [vmem:[%s5 + $0x68] sm:$0xff]
    %v1327 = vld [vmem:[%s5 + $0x70] sm:$0xff]
    %v1328 = vld [vmem:[%s5 + $0x78] sm:$0xff]
    %1329 = vmatprep.subr.mxu0 0.0
    %1330 = vmatpush1.msra.mxu0 %v1328
    %1331 = vmatprep.subr.mxu0 0.0
    %1332 = vmatpush1.msra.mxu0 %v1327
    %1333 = vmatprep.subr.mxu0 0.0
    %1334 = vmatpush1.msra.mxu0 %v1326
    %1335 = vmatprep.subr.mxu0 0.0
    %1336 = vmatpush1.msra.mxu0 %v1325
    %1337 = vmatprep.subr.mxu0 0.0
    %1338 = vmatpush1.msra.mxu0 %v1324
    %1339 = vmatprep.subr.mxu0 0.0
    %1340 = vmatpush1.msra.mxu0 %v1323
    %1341 = vmatprep.subr.mxu0 0.0
    %1342 = vmatpush1.msra.mxu0 %v1322
    %1343 = vmatprep.subr.mxu0 0.0
    %1344 = vmatpush1.msra.mxu0 %v1321
    %1345 = vmatprep.subr.mxu0 0.0
    %1346 = vmatpush1.msra.mxu0 %v1320
    %1347 = vmatprep.subr.mxu0 0.0
    %1348 = vmatpush1.msra.mxu0 %v1319
    %1349 = vmatprep.subr.mxu0 0.0
    %1350 = vmatpush1.msra.mxu0 %v1318
    %1351 = vmatprep.subr.mxu0 0.0
    %1352 = vmatpush1.msra.mxu0 %v1317
    %1353 = vmatprep.subr.mxu0 0.0
    %1354 = vmatpush1.msra.mxu0 %v1316
    %1355 = vmatprep.subr.mxu0 0.0
    %1356 = vmatpush1.msra.mxu0 %v1315
    %1357 = vmatprep.subr.mxu0 0.0
    %1358 = vmatpush1.msra.mxu0 %v1314
    %1359 = vmatprep.subr.mxu0 0.0
    %1360 = vmatpush1.msra.mxu0 %v1313
    %1361 = vmatprep.subr.mxu0 0.0
    %1362 = vmatpush2.msra.mxu0 0.0
    %1363 = vmatprep.subr.mxu0 0.0
    %1364 = vmatpush2.msra.mxu0 0.0
    %1365 = vmatprep.subr.mxu0 0.0
    %1366 = vmatpush2.msra.mxu0 0.0
    %1367 = vmatprep.subr.mxu0 0.0
    %1368 = vmatpush2.msra.mxu0 0.0
    %1369 = vmatprep.subr.mxu0 0.0
    %1370 = vmatpush2.msra.mxu0 0.0
    %1371 = vmatprep.subr.mxu0 0.0
    %1372 = vmatpush2.msra.mxu0 0.0
    %1373 = vmatprep.subr.mxu0 0.0
    %1374 = vmatpush2.msra.mxu0 0.0
    %1375 = vmatprep.subr.mxu0 0.0
    %1376 = vmatpush2.msra.mxu0 0.0
    %1377 = vmatprep.subr.mxu0 0.0
    %1378 = vmatpush2.msra.mxu0 0.0
    %1379 = vmatprep.subr.mxu0 0.0
    %1380 = vmatpush2.msra.mxu0 0.0
    %1381 = vmatprep.subr.mxu0 0.0
    %1382 = vmatpush2.msra.mxu0 0.0
    %1383 = vmatprep.subr.mxu0 0.0
    %1384 = vmatpush2.msra.mxu0 0.0
    %1385 = vmatprep.subr.mxu0 0.0
    %1386 = vmatpush2.msra.mxu0 0.0
    %1387 = vmatprep.subr.mxu0 0.0
    %1388 = vmatpush2.msra.mxu0 0.0
    %1389 = vmatprep.subr.mxu0 0.0
    %1390 = vmatpush2.msra.mxu0 0.0
    %1391 = vmatprep.subr.mxu0 0.0
    %1392 = vmatpush2.msra.mxu0 0.0
    %1393 = vmatprep.mubr.f32.mxu0 0.0
    %1394 = vmatmul.mubr.f32.gmra.mxu0 %v1282
    %v1395 = vpop.f32.mrf.mxu0
    %v1396 = vadd.f32 0.0, %v1395
    %v1397 = vpop.f32.mrf.mxu0
    %1398 = vmatprep.mubr.f32.mxu0 0.0
    %1399 = vmatmul.mubr.f32.gmra.mxu0 %v1284
    %v1400 = vpop.f32.mrf.mxu0
    %v1401 = vadd.f32 0.0, %v1400
    %v1402 = vpop.f32.mrf.mxu0
    %1403 = vmatprep.mubr.f32.mxu0 0.0
    %1404 = vmatmul.mubr.f32.gmra.mxu0 %v1286
    %v1405 = vpop.f32.mrf.mxu0
    %v1406 = vadd.f32 0.0, %v1405
    %v1407 = vpop.f32.mrf.mxu0
    %1408 = vmatprep.mubr.f32.mxu0 0.0
    %1409 = vmatmul.mubr.f32.gmra.mxu0 %v1288
    %v1410 = vpop.f32.mrf.mxu0
    %v1411 = vadd.f32 0.0, %v1410
    %v1412 = vpop.f32.mrf.mxu0
    %1413 = vmatprep.mubr.f32.mxu0 0.0
    %1414 = vmatmul.mubr.f32.gmra.mxu0 %v1290
    %v1415 = vpop.f32.mrf.mxu0
    %v1416 = vadd.f32 0.0, %v1415
    %v1417 = vpop.f32.mrf.mxu0
    %1418 = vmatprep.mubr.f32.mxu0 0.0
    %1419 = vmatmul.mubr.f32.gmra.mxu0 %v1292
    %v1420 = vpop.f32.mrf.mxu0
    %v1421 = vadd.f32 0.0, %v1420
    %v1422 = vpop.f32.mrf.mxu0
    %1423 = vmatprep.mubr.f32.mxu0 0.0
    %1424 = vmatmul.mubr.f32.gmra.mxu0 %v1294
    %v1425 = vpop.f32.mrf.mxu0
    %v1426 = vadd.f32 0.0, %v1425
    %v1427 = vpop.f32.mrf.mxu0
    %1428 = vmatprep.mubr.f32.mxu0 0.0
    %1429 = vmatmul.mubr.f32.gmra.mxu0 %v1296
    %v1430 = vpop.f32.mrf.mxu0
    %v1431 = vadd.f32 0.0, %v1430
    %v1432 = vpop.f32.mrf.mxu0
    %1433 = vmatprep.mubr.f32.mxu0 0.0
    %1434 = vmatmul.mubr.f32.gmra.mxu0 %v1298
    %v1435 = vpop.f32.mrf.mxu0
    %v1436 = vadd.f32 0.0, %v1435
    %v1437 = vpop.f32.mrf.mxu0
    %1438 = vmatprep.mubr.f32.mxu0 0.0
    %1439 = vmatmul.mubr.f32.gmra.mxu0 %v1300
    %v1440 = vpop.f32.mrf.mxu0
    %v1441 = vadd.f32 0.0, %v1440
    %v1442 = vpop.f32.mrf.mxu0
    %1443 = vmatprep.mubr.f32.mxu0 0.0
    %1444 = vmatmul.mubr.f32.gmra.mxu0 %v1302
    %v1445 = vpop.f32.mrf.mxu0
    %v1446 = vadd.f32 0.0, %v1445
    %v1447 = vpop.f32.mrf.mxu0
    %1448 = vmatprep.mubr.f32.mxu0 0.0
    %1449 = vmatmul.mubr.f32.gmra.mxu0 %v1304
    %v1450 = vpop.f32.mrf.mxu0
    %v1451 = vadd.f32 0.0, %v1450
    %v1452 = vpop.f32.mrf.mxu0
    %1453 = vmatprep.mubr.f32.mxu0 0.0
    %1454 = vmatmul.mubr.f32.gmra.mxu0 %v1306
    %v1455 = vpop.f32.mrf.mxu0
    %v1456 = vadd.f32 0.0, %v1455
    %v1457 = vpop.f32.mrf.mxu0
    %1458 = vmatprep.mubr.f32.mxu0 0.0
    %1459 = vmatmul.mubr.f32.gmra.mxu0 %v1308
    %v1460 = vpop.f32.mrf.mxu0
    %v1461 = vadd.f32 0.0, %v1460
    %v1462 = vpop.f32.mrf.mxu0
    %1463 = vmatprep.mubr.f32.mxu0 0.0
    %1464 = vmatmul.mubr.f32.gmra.mxu0 %v1310
    %v1465 = vpop.f32.mrf.mxu0
    %v1466 = vadd.f32 0.0, %v1465
    %v1467 = vpop.f32.mrf.mxu0
    %1468 = vmatprep.mubr.f32.mxu0 0.0
    %1469 = vmatmul.mubr.f32.gmra.mxu0 %v1312
    %v1470 = vpop.f32.mrf.mxu0
    %v1471 = vadd.f32 0.0, %v1470
    %v1472 = vpop.f32.mrf.mxu0
    %1473 = vdwg.mxu0
    %v1474 = vrcp.pop %v1396
    %v1475 = vrcp.pop %v1401
    %v1476 = vrcp.pop %v1406
    %v1477 = vrcp.pop %v1411
    %v1478 = vrcp.pop %v1416
    %v1479 = vrcp.pop %v1421
    %v1480 = vrcp.pop %v1426
    %v1481 = vrcp.pop %v1431
    %v1482 = vrcp.pop %v1436
    %v1483 = vrcp.pop %v1441
    %v1484 = vrcp.pop %v1446
    %v1485 = vrcp.pop %v1451
    %v1486 = vrcp.pop %v1456
    %v1487 = vrcp.pop %v1461
    %v1488 = vrcp.pop %v1466
    %v1489 = vrcp.pop %v1471
    %v1490 = vld [vmem:[#allocation6 + $0x7] sm:$0x1]
    %v1491 = vlaneseq
    %v1492 = vshrl.u32 %v1491, 7
    %v1493 = vsub.s32 0, %v1492
    %v1494 = vrot.slane %v1490, %v1493
    %v1495 = vadd.f32 %v1134, %v1494
    %v1496 = vadd.f32 %v1139, %v1494
    %v1497 = vadd.f32 %v1144, %v1494
    %v1498 = vadd.f32 %v1149, %v1494
    %v1499 = vadd.f32 %v1154, %v1494
    %v1500 = vadd.f32 %v1159, %v1494
    %v1501 = vadd.f32 %v1164, %v1494
    %v1502 = vadd.f32 %v1169, %v1494
    %v1503 = vadd.f32 %v1174, %v1494
    %v1504 = vadd.f32 %v1179, %v1494
    %v1505 = vadd.f32 %v1184, %v1494
    %v1506 = vadd.f32 %v1189, %v1494
    %v1507 = vadd.f32 %v1194, %v1494
    %v1508 = vadd.f32 %v1199, %v1494
    %v1509 = vadd.f32 %v1204, %v1494
    %v1510 = vadd.f32 %v1209, %v1494
    %v1511 = vmax.f32 %v1495, 0.0
    %v1512 = vmax.f32 %v1496, 0.0
    %v1513 = vmax.f32 %v1497, 0.0
    %v1514 = vmax.f32 %v1498, 0.0
    %v1515 = vmax.f32 %v1499, 0.0
    %v1516 = vmax.f32 %v1500, 0.0
    %v1517 = vmax.f32 %v1501, 0.0
    %v1518 = vmax.f32 %v1502, 0.0
    %v1519 = vmax.f32 %v1503, 0.0
    %v1520 = vmax.f32 %v1504, 0.0
    %v1521 = vmax.f32 %v1505, 0.0
    %v1522 = vmax.f32 %v1506, 0.0
    %v1523 = vmax.f32 %v1507, 0.0
    %v1524 = vmax.f32 %v1508, 0.0
    %v1525 = vmax.f32 %v1509, 0.0
    %v1526 = vmax.f32 %v1510, 0.0
    %1543 = vrot.lane.b32.xlu0 %v1474, 9
    %v1544 = vpop.permute.xlu0 %1543
    %1545 = vrot.lane.b32.xlu0 %v1475, 9
    %v1546 = vpop.permute.xlu0 %1545
    %1547 = vrot.lane.b32.xlu0 %v1476, 9
    %v1548 = vpop.permute.xlu0 %1547
    %1549 = vrot.lane.b32.xlu0 %v1477, 9
    %v1550 = vpop.permute.xlu0 %1549
    %1551 = vrot.lane.b32.xlu0 %v1478, 9
    %v1552 = vpop.permute.xlu0 %1551
    %1553 = vrot.lane.b32.xlu0 %v1479, 9
    %v1554 = vpop.permute.xlu0 %1553
    %1555 = vrot.lane.b32.xlu0 %v1480, 9
    %v1556 = vpop.permute.xlu0 %1555
    %1557 = vrot.lane.b32.xlu0 %v1481, 9
    %v1558 = vpop.permute.xlu0 %1557
    %1559 = vrot.lane.b32.xlu0 %v1482, 9
    %v1560 = vpop.permute.xlu0 %1559
    %1561 = vrot.lane.b32.xlu0 %v1483, 9
    %v1562 = vpop.permute.xlu0 %1561
    %1563 = vrot.lane.b32.xlu0 %v1484, 9
    %v1564 = vpop.permute.xlu0 %1563
    %1565 = vrot.lane.b32.xlu0 %v1485, 9
    %v1566 = vpop.permute.xlu0 %1565
    %1567 = vrot.lane.b32.xlu0 %v1486, 9
    %v1568 = vpop.permute.xlu0 %1567
    %1569 = vrot.lane.b32.xlu0 %v1487, 9
    %v1570 = vpop.permute.xlu0 %1569
    %1571 = vrot.lane.b32.xlu0 %v1488, 9
    %v1572 = vpop.permute.xlu0 %1571
    %1573 = vrot.lane.b32.xlu0 %v1489, 9
    %v1574 = vpop.permute.xlu0 %1573
    %v1591 = vmul.f32 %v1511, %v1544
    %v1592 = vmul.f32 %v1512, %v1546
    %v1593 = vmul.f32 %v1513, %v1548
    %v1594 = vmul.f32 %v1514, %v1550
    %v1595 = vmul.f32 %v1515, %v1552
    %v1596 = vmul.f32 %v1516, %v1554
    %v1597 = vmul.f32 %v1517, %v1556
    %v1598 = vmul.f32 %v1518, %v1558
    %v1599 = vmul.f32 %v1519, %v1560
    %v1600 = vmul.f32 %v1520, %v1562
    %v1601 = vmul.f32 %v1521, %v1564
    %v1602 = vmul.f32 %v1522, %v1566
    %v1603 = vmul.f32 %v1523, %v1568
    %v1604 = vmul.f32 %v1524, %v1570
    %v1605 = vmul.f32 %v1525, %v1572
    %v1606 = vmul.f32 %v1526, %v1574
    %1608 = vset.pattern.permute.xlu0 8
    %1609 = vperm.xlu0 %1608, %v1591
    %v1610 = vpop.permute.xlu0 %1609
    %1613 = vset.pattern.permute.xlu0 8
    %1614 = vperm.xlu0 %1613, %v1592
    %v1615 = vpop.permute.xlu0 %1614
    %1618 = vset.pattern.permute.xlu0 8
    %1619 = vperm.xlu0 %1618, %v1593
    %v1620 = vpop.permute.xlu0 %1619
    %1623 = vset.pattern.permute.xlu0 8
    %1624 = vperm.xlu0 %1623, %v1594
    %v1625 = vpop.permute.xlu0 %1624
    %1628 = vset.pattern.permute.xlu0 8
    %1629 = vperm.xlu0 %1628, %v1595
    %v1630 = vpop.permute.xlu0 %1629
    %1633 = vset.pattern.permute.xlu0 8
    %1634 = vperm.xlu0 %1633, %v1596
    %v1635 = vpop.permute.xlu0 %1634
    %1638 = vset.pattern.permute.xlu0 8
    %1639 = vperm.xlu0 %1638, %v1597
    %v1640 = vpop.permute.xlu0 %1639
    %1643 = vset.pattern.permute.xlu0 8
    %1644 = vperm.xlu0 %1643, %v1598
    %v1645 = vpop.permute.xlu0 %1644
    %1648 = vset.pattern.permute.xlu0 8
    %1649 = vperm.xlu0 %1648, %v1599
    %v1650 = vpop.permute.xlu0 %1649
    %1653 = vset.pattern.permute.xlu0 8
    %1654 = vperm.xlu0 %1653, %v1600
    %v1655 = vpop.permute.xlu0 %1654
    %1658 = vset.pattern.permute.xlu0 8
    %1659 = vperm.xlu0 %1658, %v1601
    %v1660 = vpop.permute.xlu0 %1659
    %1663 = vset.pattern.permute.xlu0 8
    %1664 = vperm.xlu0 %1663, %v1602
    %v1665 = vpop.permute.xlu0 %1664
    %1668 = vset.pattern.permute.xlu0 8
    %1669 = vperm.xlu0 %1668, %v1603
    %v1670 = vpop.permute.xlu0 %1669
    %1673 = vset.pattern.permute.xlu0 8
    %1674 = vperm.xlu0 %1673, %v1604
    %v1675 = vpop.permute.xlu0 %1674
    %1678 = vset.pattern.permute.xlu0 8
    %1679 = vperm.xlu0 %1678, %v1605
    %v1680 = vpop.permute.xlu0 %1679
    %1683 = vset.pattern.permute.xlu0 8
    %1684 = vperm.xlu0 %1683, %v1606
    %v1685 = vpop.permute.xlu0 %1684
    %v1687 = vmul.f32 %v1610, %v1396
    %v1688 = vmul.f32 %v1615, %v1401
    %v1689 = vmul.f32 %v1620, %v1406
    %v1690 = vmul.f32 %v1625, %v1411
    %v1691 = vmul.f32 %v1630, %v1416
    %v1692 = vmul.f32 %v1635, %v1421
    %v1693 = vmul.f32 %v1640, %v1426
    %v1694 = vmul.f32 %v1645, %v1431
    %v1695 = vmul.f32 %v1650, %v1436
    %v1696 = vmul.f32 %v1655, %v1441
    %v1697 = vmul.f32 %v1660, %v1446
    %v1698 = vmul.f32 %v1665, %v1451
    %v1699 = vmul.f32 %v1670, %v1456
    %v1700 = vmul.f32 %v1675, %v1461
    %v1701 = vmul.f32 %v1680, %v1466
    %v1702 = vmul.f32 %v1685, %v1471
    %1704 = vset.pattern.permute.xlu0 9
    %1705 = vperm.xlu0 %1704, %v1495
    %v1706 = vpop.permute.xlu0 %1705
    %1709 = vset.pattern.permute.xlu0 9
    %1710 = vperm.xlu0 %1709, %v1496
    %v1711 = vpop.permute.xlu0 %1710
    %1714 = vset.pattern.permute.xlu0 9
    %1715 = vperm.xlu0 %1714, %v1497
    %v1716 = vpop.permute.xlu0 %1715
    %1719 = vset.pattern.permute.xlu0 9
    %1720 = vperm.xlu0 %1719, %v1498
    %v1721 = vpop.permute.xlu0 %1720
    %1724 = vset.pattern.permute.xlu0 9
    %1725 = vperm.xlu0 %1724, %v1499
    %v1726 = vpop.permute.xlu0 %1725
    %1729 = vset.pattern.permute.xlu0 9
    %1730 = vperm.xlu0 %1729, %v1500
    %v1731 = vpop.permute.xlu0 %1730
    %1734 = vset.pattern.permute.xlu0 9
    %1735 = vperm.xlu0 %1734, %v1501
    %v1736 = vpop.permute.xlu0 %1735
    %1739 = vset.pattern.permute.xlu0 9
    %1740 = vperm.xlu0 %1739, %v1502
    %v1741 = vpop.permute.xlu0 %1740
    %1744 = vset.pattern.permute.xlu0 9
    %1745 = vperm.xlu0 %1744, %v1503
    %v1746 = vpop.permute.xlu0 %1745
    %1749 = vset.pattern.permute.xlu0 9
    %1750 = vperm.xlu0 %1749, %v1504
    %v1751 = vpop.permute.xlu0 %1750
    %1754 = vset.pattern.permute.xlu0 9
    %1755 = vperm.xlu0 %1754, %v1505
    %v1756 = vpop.permute.xlu0 %1755
    %1759 = vset.pattern.permute.xlu0 9
    %1760 = vperm.xlu0 %1759, %v1506
    %v1761 = vpop.permute.xlu0 %1760
    %1764 = vset.pattern.permute.xlu0 9
    %1765 = vperm.xlu0 %1764, %v1507
    %v1766 = vpop.permute.xlu0 %1765
    %1769 = vset.pattern.permute.xlu0 9
    %1770 = vperm.xlu0 %1769, %v1508
    %v1771 = vpop.permute.xlu0 %1770
    %1774 = vset.pattern.permute.xlu0 9
    %1775 = vperm.xlu0 %1774, %v1509
    %v1776 = vpop.permute.xlu0 %1775
    %1779 = vset.pattern.permute.xlu0 9
    %1780 = vperm.xlu0 %1779, %v1510
    %v1781 = vpop.permute.xlu0 %1780
    %v1783 = vadd.f32 %v1687, %v1706
    %v1784 = vadd.f32 %v1688, %v1711
    %v1785 = vadd.f32 %v1689, %v1716
    %v1786 = vadd.f32 %v1690, %v1721
    %v1787 = vadd.f32 %v1691, %v1726
    %v1788 = vadd.f32 %v1692, %v1731
    %v1789 = vadd.f32 %v1693, %v1736
    %v1790 = vadd.f32 %v1694, %v1741
    %v1791 = vadd.f32 %v1695, %v1746
    %v1792 = vadd.f32 %v1696, %v1751
    %v1793 = vadd.f32 %v1697, %v1756
    %v1794 = vadd.f32 %v1698, %v1761
    %v1795 = vadd.f32 %v1699, %v1766
    %v1796 = vadd.f32 %v1700, %v1771
    %v1797 = vadd.f32 %v1701, %v1776
    %v1798 = vadd.f32 %v1702, %v1781
    %1799 = vxpose.xlu0.b32.start [1/16] %v1783, 128
    %1800 = vxpose.xlu0.b32.cont [2/16] %v1784, 128
    %1801 = vxpose.xlu0.b32.cont [3/16] %v1785, 128
    %1802 = vxpose.xlu0.b32.cont [4/16] %v1786, 128
    %1803 = vxpose.xlu0.b32.cont [5/16] %v1787, 128
    %1804 = vxpose.xlu0.b32.cont [6/16] %v1788, 128
    %1805 = vxpose.xlu0.b32.cont [7/16] %v1789, 128
    %1806 = vxpose.xlu0.b32.cont [8/16] %v1790, 128
    %1807 = vxpose.xlu0.b32.cont [9/16] %v1791, 128
    %1808 = vxpose.xlu0.b32.cont [10/16] %v1792, 128
    %1809 = vxpose.xlu0.b32.cont [11/16] %v1793, 128
    %1810 = vxpose.xlu0.b32.cont [12/16] %v1794, 128
    %1811 = vxpose.xlu0.b32.cont [13/16] %v1795, 128
    %1812 = vxpose.xlu0.b32.cont [14/16] %v1796, 128
    %1813 = vxpose.xlu0.b32.cont [15/16] %v1797, 128
    %1814 = vxpose.xlu0.b32.end [16/16] %v1798, 128
    %v1815 = vpop.trf.xlu0
    %v1816 = vpop.trf.xlu0
    %v1817 = vpop.trf.xlu0
    %v1818 = vpop.trf.xlu0
    %v1819 = vpop.trf.xlu0
    %v1820 = vpop.trf.xlu0
    %v1821 = vpop.trf.xlu0
    %v1822 = vpop.trf.xlu0
    %v1823 = vpop.trf.xlu0
    %v1824 = vpop.trf.xlu0
    %v1825 = vpop.trf.xlu0
    %v1826 = vpop.trf.xlu0
    %v1827 = vpop.trf.xlu0
    %v1828 = vpop.trf.xlu0
    %v1829 = vpop.trf.xlu0
    %v1830 = vpop.trf.xlu0
    %1831 = vst [vmem:[%s6] sm:$0xff] %v1815
    // Predicated region
    $region38: #{ncqr_forward.1} parent=1 // pred_check
      _
    $region39: #{ncqr_forward.1} parent=1 // pred_check_branch
      %1833 = sbr.rel (0) target = $region41
    $region40: #{ncqr_forward.1} parent=1 // pred_region
      _
    $region41: #{ncqr_forward.1} parent=1 // pred_fallthru
      _
    // Predicated region
    $region42: #{ncqr_forward.1} parent=1 // pred_check
      _
    $region43: #{ncqr_forward.1} parent=1 // pred_check_branch
      %1835 = sbr.rel (0) target = $region45
    $region44: #{ncqr_forward.1} parent=1 // pred_region
      _
    $region45: #{ncqr_forward.1} parent=1 // pred_fallthru
      _
    %1836 = vsyncpa [#allocation3], 1
    %1837 = vsyncpa [#allocation5], 1

</llo_original>
